<compile_context>
chip_gen: v6e
topology: v6e:2x2x1
jax: 0.10.0
libtpu: 0.0.40
codegen_flags: <defaults>
</compile_context>

<pallas_src>
import jax
import jax.numpy as jnp
from jax.experimental import pallas as pl
from jax.experimental.pallas import tpu as pltpu

PART = 4
BN_EPS = 1e-5


# ----------------------------- fused PCB head kernel ----------------------------------------------------
def _pcb_head_kernel(x_ref, w1_ref, b1_ref, w2_ref, b2_ref, f_ref, y_ref):
    # x_ref : (nb, Hp*W, C) bf16  -- part-p stripe of nb batch rows (NHWC-contiguous, read once from HBM)
    # w1_ref: (C, NB) bf16   b1_ref: (1, NB) f32      (eval-mode BatchNorm1d folded in)
    # w2_ref: (NB, NCLSP) bf16  b2_ref: (1, NCLSP) f32
    # f_ref : (nb, C) f32    y_ref: (nb, NCLSP) f32
    xp = jnp.mean(x_ref[...].astype(jnp.float32), axis=1)          # AdaptiveAvgPool2d((4,1)) bin, f32
    f_ref[...] = xp                                                 # pooled features (torch `f`, per part)
    # ClassBlock: (Linear + folded BN) -> Dropout(identity, eval) -> Linear; bf16 MXU, f32 accumulate.
    h = jnp.dot(xp.astype(jnp.bfloat16), w1_ref[...],
                preferred_element_type=jnp.float32) + b1_ref[...]
    y_ref[...] = jnp.dot(h.astype(jnp.bfloat16), w2_ref[...],
                         preferred_element_type=jnp.float32) + b2_ref[...]


def _pick_nb(B):
    # Batch rows per grid step: big enough to amortize the ~0.35us/step pipeline overhead, small enough that
    # the double-buffered feature stripe + one part's weights stay well under every generation's scoped-VMEM
    # default.  Keep nb a multiple of 8 (or == B) so the (nb, C)/(nb, NCLSP) output blocks stay sublane-aligned.
    for nb in (16, 8):
        if B % nb == 0:
            return nb
    return B


def pcb_head(feat_nhwc, packed, *, nb=None):
    """Fused pooling + 4 ClassBlocks. feat_nhwc: (B,H,W,C) -> (f_parts (PART,B,C) f32, logits (PART,B,NCLSP) f32)."""
    B, H, W, C = feat_nhwc.shape
    assert H % PART == 0, "AdaptiveAvgPool2d((4,1)) with uneven H bins is not implemented"
    hw = (H // PART) * W
    assert hw % 8 == 0, "part stripe (H/PART * W) must be sublane-aligned"
    NB = packed["w1"].shape[-1]
    NCLSP = packed["w2"].shape[-1]
    if nb is None:
        nb = _pick_nb(B)
    assert B % nb == 0

    # Zero-copy view: part-p stripe of batch b is rows [p*hw, (p+1)*hw) of dim 1.  No HBM transpose.
    x = feat_nhwc.reshape(B, H * W, C)

    return pl.pallas_call(
        _pcb_head_kernel,
        out_shape=(jax.ShapeDtypeStruct((PART, B, C), jnp.float32),
                   jax.ShapeDtypeStruct((PART, B, NCLSP), jnp.float32)),
        grid=(PART, B // nb),                                   # part OUTER -> weights DMA'd once per part
        in_specs=[
            pl.BlockSpec((nb, hw, C), lambda p, b: (b, p, 0)),          # feature stripe (streamed)
            pl.BlockSpec((None, C, NB), lambda p, b: (p, 0, 0)),        # folded W1 (in, out), bf16
            pl.BlockSpec((None, 1, NB), lambda p, b: (p, 0, 0)),        # folded b1, f32
            pl.BlockSpec((None, NB, NCLSP), lambda p, b: (p, 0, 0)),    # W2 (in, out), bf16, class-padded
            pl.BlockSpec((None, 1, NCLSP), lambda p, b: (p, 0, 0)),     # b2, f32, class-padded
        ],
        out_specs=(pl.BlockSpec((None, nb, C), lambda p, b: (p, b, 0)),
                   pl.BlockSpec((None, nb, NCLSP), lambda p, b: (p, b, 0))),
        compiler_params=pltpu.CompilerParams(
            dimension_semantics=("parallel", "parallel")),      # every output block written exactly once
    )(x, packed["w1"], packed["b1"], packed["w2"], packed["b2"])


# ----------------------------- PCB forward (glue on tiny tensors only) ----------------------------------
def pcb_forward(feat_nhwc, packed, num_classes):
    B, H, W, C = feat_nhwc.shape
    f_parts, logits = pcb_head(feat_nhwc, packed)               # (PART,B,C) f32, (PART,B,NCLSP) f32
    # torch: f = avgpool(x).view(B, C*part) is row-major over (C, PART); tiny (B*C*PART) tensor, so the
    # layout interleave stays in the wrapper instead of forcing a lane shuffle inside the kernel.
    f = jnp.transpose(f_parts, (1, 2, 0)).reshape(B, C * PART)
    y = [logits[i, :, :num_classes] for i in range(PART)]       # drop the class padding
    return f, y


# ----------------------------- host-side param preparation (BN folding, bf16, class padding) ------------
def pack_params(params):
    """Fold eval-mode BatchNorm1d into Linear1, cast weights to bf16, pad the class dim to a multiple of 128."""
    scale = params["gamma"] * jax.lax.rsqrt(params["var"] + BN_EPS)        # (PART, 1, NB)
    w1f = params["w1"] * scale                                             # (PART, C, NB)
    b1f = (params["b1"] - params["mean"]) * scale + params["beta"]         # (PART, 1, NB)
    ncls = params["w2"].shape[-1]
    ncls_pad = ((ncls + 127) // 128) * 128
    pad = ncls_pad - ncls
    w2p = jnp.pad(params["w2"], ((0, 0), (0, 0), (0, pad)))
    b2p = jnp.pad(params["b2"], ((0, 0), (0, 0), (0, pad)))
    return dict(
        w1=w1f.astype(jnp.bfloat16),
        b1=b1f.astype(jnp.float32),
        w2=w2p.astype(jnp.bfloat16),
        b2=b2p.astype(jnp.float32),
    )


# ----------------------------- deterministic synthetic parameters ---------------------------------------
def init_params(key, C, NB, NCLS):
    ks = jax.random.split(key, 2 * PART)
    std1 = (2.0 / NB) ** 0.5          # kaiming_normal, mode='fan_out', a=0 on Linear(C, NB)
    w1 = [jax.random.normal(ks[2 * i], (C, NB), jnp.float32) * std1 for i in range(PART)]
    w2 = [jax.random.normal(ks[2 * i + 1], (NB, NCLS), jnp.float32) * 0.001 for i in range(PART)]
    return dict(
        w1=jnp.stack(w1),                                  # (PART, C, NB)  pre-transposed to (in, out)
        b1=jnp.zeros((PART, 1, NB), jnp.float32),
        gamma=jnp.ones((PART, 1, NB), jnp.float32),        # BatchNorm1d default init
        beta=jnp.zeros((PART, 1, NB), jnp.float32),
        mean=jnp.zeros((PART, 1, NB), jnp.float32),        # running stats (eval mode)
        var=jnp.ones((PART, 1, NB), jnp.float32),
        w2=jnp.stack(w2),                                  # (PART, NB, NCLS)
        b2=jnp.zeros((PART, 1, NCLS), jnp.float32),
    )


# ----------------------------- plain-JAX references -----------------------------------------------------
def _pool_nhwc(feat):
    B, H, W, C = feat.shape
    return feat.astype(jnp.float32).reshape(B, PART, (H // PART) * W, C).mean(axis=2)   # (B, PART, C)


def pcb_reference_packed(feat, packed, num_classes):
    """Same dtype path as the kernel (bf16 matmuls, f32 accumulate) for a tight correctness check."""
    B, H, W, C = feat.shape
    pooled = _pool_nhwc(feat)
    f = jnp.transpose(pooled, (0, 2, 1)).reshape(B, C * PART)
    y = []
    for i in range(PART):
        x = pooled[:, i, :].astype(jnp.bfloat16)
        h = jnp.dot(x, packed["w1"][i], preferred_element_type=jnp.float32) + packed["b1"][i]
        logits = jnp.dot(h.astype(jnp.bfloat16), packed["w2"][i],
                         preferred_element_type=jnp.float32) + packed["b2"][i]
        y.append(logits[:, :num_classes])
    return f, y


def pcb_reference_f32(feat, params):
    """Unfolded f32 math (Linear -> BN(eval) -> Dropout(identity) -> Linear): the original module semantics."""
    B, H, W, C = feat.shape
    pooled = _pool_nhwc(feat)
    f = jnp.transpose(pooled, (0, 2, 1)).reshape(B, C * PART)
    y = []
    for i in range(PART):
        x = pooled[:, i, :]
        h = x @ params["w1"][i] + params["b1"][i]
        h = (h - params["mean"][i]) * jax.lax.rsqrt(params["var"][i] + BN_EPS) \
            * params["gamma"][i] + params["beta"][i]
        y.append(h @ params["w2"][i] + params["b2"][i])
    return f, y


if __name__ == "__main__":
    key = jax.random.PRNGKey(0)
    kx, kp = jax.random.split(key)

    # Small stand-in shapes (real PCB: C=2048, H=24, W=8, NB=256, class_num=751).
    B, C, H, W = 32, 256, 24, 8
    NB, NCLS = 256, 10

    # Backbone output feature map, NHWC bf16 (XLA convs prefer NHWC; bf16 halves the dominant HBM stream).
    feat = jax.random.normal(kx, (B, H, W, C), jnp.float32).astype(jnp.bfloat16)
    params = init_params(kp, C, NB, NCLS)
    packed = pack_params(params)

    f, y = pcb_forward(feat, packed, NCLS)
    jax.block_until_ready(f)
    for yi in y:
        jax.block_until_ready(yi)

    assert f.shape == (B, C * PART)
    assert len(y) == PART and all(yi.shape == (B, NCLS) for yi in y)

    # Tight check against a reference that follows the same bf16/f32 dtype path.
    f_ref, y_ref = pcb_reference_packed(feat, packed, NCLS)
    assert jnp.allclose(f, f_ref, rtol=1e-3, atol=1e-4)
    for yi, yr in zip(y, y_ref):
        assert jnp.allclose(yi, yr, rtol=1e-3, atol=1e-4)

    # Looser semantic check against the original unfolded f32 module math (bf16 quantization noise only).
    f32_ref, y32_ref = pcb_reference_f32(feat, params)
    assert jnp.allclose(f, f32_ref, rtol=1e-3, atol=1e-4)
    for yi, yr in zip(y, y32_ref):
        assert jnp.allclose(yi, yr, rtol=5e-2, atol=1e-3)

    print("KERNEL_OK")
</pallas_src>

<mosaic_0001>
module attributes {stable_mosaic.version = 11 : i64} {
  func.func @_pcb_head_kernel(%arg0: i32, %arg1: i32, %arg2: memref<16x48x256xbf16, #tpu.memory_space<vmem>>, %arg3: memref<1x256x256xbf16, #tpu.memory_space<vmem>>, %arg4: memref<1x1x256xf32, #tpu.memory_space<vmem>>, %arg5: memref<1x256x128xbf16, #tpu.memory_space<vmem>>, %arg6: memref<1x1x128xf32, #tpu.memory_space<vmem>>, %arg7: memref<1x16x256xf32, #tpu.memory_space<vmem>>, %arg8: memref<1x16x128xf32, #tpu.memory_space<vmem>>) attributes {dimension_semantics = [#tpu.dimension_semantics<parallel>, #tpu.dimension_semantics<parallel>], iteration_bounds = array<i64: 4, 2>, scalar_prefetch = 0 : i64, scratch_operands = 0 : i64, tpu.core_type = #tpu.core_type<tc>, window_params = [{transform_indices = @transform_0, window_bounds = array<i64: 16, 48, 256>}, {transform_indices = @transform_1, window_bounds = array<i64: 1, 256, 256>}, {transform_indices = @transform_2, window_bounds = array<i64: 1, 1, 256>}, {transform_indices = @transform_3, window_bounds = array<i64: 1, 256, 128>}, {transform_indices = @transform_4, window_bounds = array<i64: 1, 1, 128>}, {transform_indices = @transform_5, window_bounds = array<i64: 1, 16, 256>}, {transform_indices = @transform_6, window_bounds = array<i64: 1, 16, 128>}]} {
    %c0 = arith.constant 0 : index
    %c0_0 = arith.constant 0 : index
    %c0_1 = arith.constant 0 : index
    %0 = vector.load %arg2[%c0, %c0_0, %c0_1] : memref<16x48x256xbf16, #tpu.memory_space<vmem>>, vector<16x48x256xbf16>
    %1 = arith.extf %0 : vector<16x48x256xbf16> to vector<16x48x256xf32>
    %cst = arith.constant dense<0.000000e+00> : vector<16x256xf32>
    %2 = vector.multi_reduction <add>, %1, %cst [1] : vector<16x48x256xf32> to vector<16x256xf32>
    %cst_2 = arith.constant 4.800000e+01 : f32
    %3 = vector.broadcast %cst_2 : f32 to vector<16x256xf32>
    %4 = arith.divf %2, %3 : vector<16x256xf32>
    %c0_3 = arith.constant 0 : index
    %c0_4 = arith.constant 0 : index
    %c0_5 = arith.constant 0 : index
    %5 = vector.load %arg7[%c0_3, %c0_4, %c0_5] : memref<1x16x256xf32, #tpu.memory_space<vmem>>, vector<1x16x256xf32>
    %6 = vector.shape_cast %5 : vector<1x16x256xf32> to vector<16x256xf32>
    %7 = vector.shape_cast %4 : vector<16x256xf32> to vector<1x16x256xf32>
    tpu.vector_store %arg7[%c0_3, %c0_4, %c0_5], %7 {strides = array<i32>} : memref<1x16x256xf32, #tpu.memory_space<vmem>>, vector<1x16x256xf32>,
    %8 = arith.truncf %4 : vector<16x256xf32> to vector<16x256xbf16>
    %c0_6 = arith.constant 0 : index
    %c0_7 = arith.constant 0 : index
    %c0_8 = arith.constant 0 : index
    %9 = vector.load %arg3[%c0_6, %c0_7, %c0_8] : memref<1x256x256xbf16, #tpu.memory_space<vmem>>, vector<1x256x256xbf16>
    %10 = vector.shape_cast %9 : vector<1x256x256xbf16> to vector<256x256xbf16>
    %cst_9 = arith.constant dense<0.000000e+00> : vector<16x256xf32>
    %11 = tpu.matmul %8, %10, %cst_9 {dimension_numbers = #tpu.dot_dimension_numbers<[1], [0], [0], [1], [0, 0, 1, 1], [], []>} : vector<16x256xbf16>, vector<256x256xbf16>, vector<16x256xf32> -> vector<16x256xf32>
    %c0_10 = arith.constant 0 : index
    %c0_11 = arith.constant 0 : index
    %c0_12 = arith.constant 0 : index
    %12 = vector.load %arg4[%c0_10, %c0_11, %c0_12] : memref<1x1x256xf32, #tpu.memory_space<vmem>>, vector<1x1x256xf32>
    %13 = vector.shape_cast %12 : vector<1x1x256xf32> to vector<1x256xf32>
    %14 = vector.broadcast %13 : vector<1x256xf32> to vector<16x256xf32>
    %15 = arith.addf %11, %14 : vector<16x256xf32>
    %16 = arith.truncf %15 : vector<16x256xf32> to vector<16x256xbf16>
    %c0_13 = arith.constant 0 : index
    %c0_14 = arith.constant 0 : index
    %c0_15 = arith.constant 0 : index
    %17 = vector.load %arg5[%c0_13, %c0_14, %c0_15] : memref<1x256x128xbf16, #tpu.memory_space<vmem>>, vector<1x256x128xbf16>
    %18 = vector.shape_cast %17 : vector<1x256x128xbf16> to vector<256x128xbf16>
    %cst_16 = arith.constant dense<0.000000e+00> : vector<16x128xf32>
    %19 = tpu.matmul %16, %18, %cst_16 {dimension_numbers = #tpu.dot_dimension_numbers<[1], [0], [0], [1], [0, 0, 1, 1], [], []>} : vector<16x256xbf16>, vector<256x128xbf16>, vector<16x128xf32> -> vector<16x128xf32>
    %c0_17 = arith.constant 0 : index
    %c0_18 = arith.constant 0 : index
    %c0_19 = arith.constant 0 : index
    %20 = vector.load %arg6[%c0_17, %c0_18, %c0_19] : memref<1x1x128xf32, #tpu.memory_space<vmem>>, vector<1x1x128xf32>
    %21 = vector.shape_cast %20 : vector<1x1x128xf32> to vector<1x128xf32>
    %22 = vector.broadcast %21 : vector<1x128xf32> to vector<16x128xf32>
    %23 = arith.addf %19, %22 : vector<16x128xf32>
    %c0_20 = arith.constant 0 : index
    %c0_21 = arith.constant 0 : index
    %c0_22 = arith.constant 0 : index
    %24 = vector.load %arg8[%c0_20, %c0_21, %c0_22] : memref<1x16x128xf32, #tpu.memory_space<vmem>>, vector<1x16x128xf32>
    %25 = vector.shape_cast %24 : vector<1x16x128xf32> to vector<16x128xf32>
    %26 = vector.shape_cast %23 : vector<16x128xf32> to vector<1x16x128xf32>
    tpu.vector_store %arg8[%c0_20, %c0_21, %c0_22], %26 {strides = array<i32>} : memref<1x16x128xf32, #tpu.memory_space<vmem>>, vector<1x16x128xf32>,
    return
  }
  func.func @transform_0(%arg0: i32, %arg1: i32) -> (i32, i32, i32) {
    %c0_i32 = arith.constant 0 : i32
    %c0_i32_0 = arith.constant 0 : i32
    return %arg1, %arg0, %c0_i32 : i32, i32, i32
  }
  func.func @transform_1(%arg0: i32, %arg1: i32) -> (i32, i32, i32) {
    %c0_i32 = arith.constant 0 : i32
    %c0_i32_0 = arith.constant 0 : i32
    %c0_i32_1 = arith.constant 0 : i32
    return %arg0, %c0_i32, %c0_i32_0 : i32, i32, i32
  }
  func.func @transform_2(%arg0: i32, %arg1: i32) -> (i32, i32, i32) {
    %c0_i32 = arith.constant 0 : i32
    %c0_i32_0 = arith.constant 0 : i32
    %c0_i32_1 = arith.constant 0 : i32
    return %arg0, %c0_i32, %c0_i32_0 : i32, i32, i32
  }
  func.func @transform_3(%arg0: i32, %arg1: i32) -> (i32, i32, i32) {
    %c0_i32 = arith.constant 0 : i32
    %c0_i32_0 = arith.constant 0 : i32
    %c0_i32_1 = arith.constant 0 : i32
    return %arg0, %c0_i32, %c0_i32_0 : i32, i32, i32
  }
  func.func @transform_4(%arg0: i32, %arg1: i32) -> (i32, i32, i32) {
    %c0_i32 = arith.constant 0 : i32
    %c0_i32_0 = arith.constant 0 : i32
    %c0_i32_1 = arith.constant 0 : i32
    return %arg0, %c0_i32, %c0_i32_0 : i32, i32, i32
  }
  func.func @transform_5(%arg0: i32, %arg1: i32) -> (i32, i32, i32) {
    %c0_i32 = arith.constant 0 : i32
    %c0_i32_0 = arith.constant 0 : i32
    return %arg0, %arg1, %c0_i32 : i32, i32, i32
  }
  func.func @transform_6(%arg0: i32, %arg1: i32) -> (i32, i32, i32) {
    %c0_i32 = arith.constant 0 : i32
    %c0_i32_0 = arith.constant 0 : i32
    return %arg0, %arg1, %c0_i32 : i32, i32, i32
  }
}

</mosaic_0001>

<llo_original>
// kernel: tpu_custom_call.1
$region0: #{tpu_custom_call.1}
  #allocation0 [shape = 'u32[]', space=smem, size = 0x4, offset = 0x4, fixed_abs, tag = 'smem constant byte address 0x4 - core index']
  #allocation1 [shape = 'u32[144,128]{1,0:T(1,128)}', space=vmem, size = 0x12000, scoped, tag = 'internal scratch']
  #allocation14 [shape = 's32[]', space=sflag, size = 0x4, offset = 0, fixed_abs, tag = 'sflag constant byte address 0x0 - dummy sync flag']
  %s0 = inlined_call_operand.hbm [shape: bf16[32,192,256], index: 0, kind: input, shape index: {}]
  %s1 = inlined_call_operand.hbm [shape: bf16[4,256,256], index: 1, kind: input, shape index: {}]
  %s2 = inlined_call_operand.hbm [shape: f32[4,1,256], index: 2, kind: input, shape index: {}]
  %s3 = inlined_call_operand.hbm [shape: bf16[4,256,128], index: 3, kind: input, shape index: {}]
  %s4 = inlined_call_operand.hbm [shape: f32[4,1,128], index: 4, kind: input, shape index: {}]
  %s5 = inlined_call_operand.hbm [shape: f32[4,32,256], index: 5, kind: output, shape index: {0}]
  %s6 = inlined_call_operand.hbm [shape: f32[4,32,128], index: 6, kind: output, shape index: {1}]
  %7 = xla_tuple %s5, %s6
  %s8 = sld [smem:[#allocation0]]
  $region81: #{tpu_custom_call.1} parent=0
    _
  %s10 = ssub.s32 1, %s8
  %s11 = scalar_select 0, %s10, %s8
  $region1: #{tpu_custom_call.1} parent=0
    #allocation2 [shape = 'u8[786432]{0}', space=vmem, size = 0xc0000, scoped, tag = 'input window, operand 0']
    #allocation3 [shape = 's32[2]{0}', space=sflag, size = 0x8, scoped, tag = 'scoped memory for tpu_custom_call.1']
    #allocation4 [shape = 's32[2]{0}', space=sflag, size = 0x8, scoped, tag = 'scoped memory for tpu_custom_call.1']
    #allocation5 [shape = 'u8[262144]{0}', space=vmem, size = 0x40000, scoped, tag = 'input window, operand 1']
    #allocation6 [shape = 's32[2]{0}', space=sflag, size = 0x8, scoped, tag = 'scoped memory for tpu_custom_call.1']
    #allocation7 [shape = 'u8[2048]{0}', space=vmem, size = 0x800, scoped, tag = 'input window, operand 2']
    #allocation8 [shape = 'u8[131072]{0}', space=vmem, size = 0x20000, scoped, tag = 'input window, operand 3']
    #allocation9 [shape = 's32[2]{0}', space=sflag, size = 0x8, scoped, tag = 'scoped memory for tpu_custom_call.1']
    #allocation10 [shape = 'u8[1024]{0}', space=vmem, size = 0x400, scoped, tag = 'input window, operand 4']
    #allocation11 [shape = 'u8[32768]{0}', space=vmem, size = 0x8000, scoped, tag = 'output window, operand 0']
    #allocation12 [shape = 'u8[16384]{0}', space=vmem, size = 0x4000, scoped, tag = 'output window, operand 1']
    #allocation13 [shape = 's32[2]{0}', space=sflag, size = 0x8, scoped, tag = 'scoped memory for tpu_custom_call.1']
    %12 = vsyncpa [#allocation3], 0
    %s13 = scalar_lea.sflag [#allocation3], 1
    %14 = vsyncpa %s13, 0
    %15 = vsyncpa [#allocation6], 0
    %s16 = scalar_lea.sflag [#allocation6], 1
    %17 = vsyncpa %s16, 0
    %18 = vsyncpa [#allocation9], 0
    %s19 = scalar_lea.sflag [#allocation9], 1
    %20 = vsyncpa %s19, 0
    %21 = vsyncpa [#allocation4], 0
    %s22 = scalar_lea.sflag [#allocation4], 1
    %23 = vsyncpa %s22, 0
    %24 = vsyncpa [#allocation13], 0
    %s25 = scalar_lea.sflag [#allocation13], 1
    %26 = vsyncpa %s25, 0
    loop: start=0, step=1, limit=10
    $region2: #{tpu_custom_call.1} parent=1 // loop_pre_header
      _
    $region3: #{tpu_custom_call.1} parent=1 // loop_header
      %s28 = sphi 0, %s32
      %p29 = scmp.ge.s32.totalorder %s28, 10
      %s35 = sphi 0, %s47
      %s36 = sphi 0, %s43
      %s37 = sphi 0, %s35
      %s38 = sphi 0, %s36
      %s39 = sphi 0, %s37
      %s40 = sphi 0, %s38
      %s52 = sphi 0, %s54
      %s55 = sphi 0, %s52
      %s56 = sphi 0, %s55
      %s72 = sphi 0, %s56
      %s78 = sphi 0, %s80
      %s81 = sphi 0, %s78
      %s82 = sphi 0, %s81
      %s98 = sphi 0, %s82
      %s104 = sphi 0, %s106
      %s107 = sphi 0, %s104
      %s108 = sphi 0, %s107
      %s124 = sphi 0, %s108
      %s130 = sphi 0, %s132
      %s133 = sphi 0, %s130
      %s134 = sphi 0, %s133
      %s150 = sphi 0, %s134
      %s156 = sphi 0, %s158
      %s159 = sphi 0, %s156
      %s160 = sphi 0, %s159
      %s176 = sphi 0, %s160
      %s184 = sphi 0, %s186
      %s187 = sphi 0, %s184
      %s188 = sphi 0, %s187
      %s204 = sphi 0, %s188
      %s212 = sphi 0, %s214
      %s215 = sphi 0, %s212
      %s216 = sphi 0, %s215
      %s232 = sphi 0, %s216
    $region4: #{tpu_custom_call.1} parent=1 // loop_header_branch
      %31 = sbr.rel (%p29) target = $region8
    $region5: #{tpu_custom_call.1} parent=1 // loop_body
      %s33 = ssub.s32 %s28, 1
      %s34 = ssub.s32 %s28, 2
      %s41 = sadd.s32 1, %s36
      %p42 = scmp.ge.s32.totalorder %s41, 2
      %s43 = scalar_select %p42, 0, %s41
      %s44 = sadd.s32 1, %s35
      %s45 = scalar_select %p42, %s44, %s35
      %p46 = scmp.ge.s32.totalorder %s45, 4
      %s47 = scalar_select %p46, 0, %s45
      %s48 = ssub.s32 %s36, %s43
      %s49 = ssub.s32 %s35, %s47
      %s50 = sor.u32 %s48, %s49
      %p51 = scmp.eq.s32.totalorder %s50, 0
      %s53 = sadd.s32 %s52, 1
      %s54 = scalar_select %p51, %s52, %s53
      %p57 = pneg %p51
      %p58 = scmp.eq.s32.totalorder %s28, 7
      %p59 = por %p57, %p58
      %p60 = scmp.ne.s32.totalorder %s52, %s55
      %p61 = scmp.eq.s32.totalorder %s28, 0
      %p62 = por %p60, %p61
      %p63 = scmp.ne.s32.totalorder %s52, %s55
      %p64 = scmp.eq.s32.totalorder %s33, 7
      %p65 = por %p63, %p64
      %p66 = scmp.ne.s32.totalorder %s55, %s56
      %p67 = scmp.eq.s32.totalorder %s33, 0
      %p68 = por %p66, %p67
      %p69 = scmp.ne.s32.totalorder %s55, %s56
      %p70 = scmp.eq.s32.totalorder %s34, 7
      %p71 = por %p69, %p70
      %p73 = scmp.ne.s32.totalorder %s56, %s72
      %p74 = scmp.eq.s32.totalorder %s34, 0
      %p75 = por %p73, %p74
      %s76 = ssub.s32 %s35, %s47
      %p77 = scmp.eq.s32.totalorder %s76, 0
      %s79 = sadd.s32 %s78, 1
      %s80 = scalar_select %p77, %s78, %s79
      %p83 = pneg %p77
      %p84 = scmp.eq.s32.totalorder %s28, 7
      %p85 = por %p83, %p84
      %p86 = scmp.ne.s32.totalorder %s78, %s81
      %p87 = scmp.eq.s32.totalorder %s28, 0
      %p88 = por %p86, %p87
      %p89 = scmp.ne.s32.totalorder %s78, %s81
      %p90 = scmp.eq.s32.totalorder %s33, 7
      %p91 = por %p89, %p90
      %p92 = scmp.ne.s32.totalorder %s81, %s82
      %p93 = scmp.eq.s32.totalorder %s33, 0
      %p94 = por %p92, %p93
      %p95 = scmp.ne.s32.totalorder %s81, %s82
      %p96 = scmp.eq.s32.totalorder %s34, 7
      %p97 = por %p95, %p96
      %p99 = scmp.ne.s32.totalorder %s82, %s98
      %p100 = scmp.eq.s32.totalorder %s34, 0
      %p101 = por %p99, %p100
      %s102 = ssub.s32 %s35, %s47
      %p103 = scmp.eq.s32.totalorder %s102, 0
      %s105 = sadd.s32 %s104, 1
      %s106 = scalar_select %p103, %s104, %s105
      %p109 = pneg %p103
      %p110 = scmp.eq.s32.totalorder %s28, 7
      %p111 = por %p109, %p110
      %p112 = scmp.ne.s32.totalorder %s104, %s107
      %p113 = scmp.eq.s32.totalorder %s28, 0
      %p114 = por %p112, %p113
      %p115 = scmp.ne.s32.totalorder %s104, %s107
      %p116 = scmp.eq.s32.totalorder %s33, 7
      %p117 = por %p115, %p116
      %p118 = scmp.ne.s32.totalorder %s107, %s108
      %p119 = scmp.eq.s32.totalorder %s33, 0
      %p120 = por %p118, %p119
      %p121 = scmp.ne.s32.totalorder %s107, %s108
      %p122 = scmp.eq.s32.totalorder %s34, 7
      %p123 = por %p121, %p122
      %p125 = scmp.ne.s32.totalorder %s108, %s124
      %p126 = scmp.eq.s32.totalorder %s34, 0
      %p127 = por %p125, %p126
      %s128 = ssub.s32 %s35, %s47
      %p129 = scmp.eq.s32.totalorder %s128, 0
      %s131 = sadd.s32 %s130, 1
      %s132 = scalar_select %p129, %s130, %s131
      %p135 = pneg %p129
      %p136 = scmp.eq.s32.totalorder %s28, 7
      %p137 = por %p135, %p136
      %p138 = scmp.ne.s32.totalorder %s130, %s133
      %p139 = scmp.eq.s32.totalorder %s28, 0
      %p140 = por %p138, %p139
      %p141 = scmp.ne.s32.totalorder %s130, %s133
      %p142 = scmp.eq.s32.totalorder %s33, 7
      %p143 = por %p141, %p142
      %p144 = scmp.ne.s32.totalorder %s133, %s134
      %p145 = scmp.eq.s32.totalorder %s33, 0
      %p146 = por %p144, %p145
      %p147 = scmp.ne.s32.totalorder %s133, %s134
      %p148 = scmp.eq.s32.totalorder %s34, 7
      %p149 = por %p147, %p148
      %p151 = scmp.ne.s32.totalorder %s134, %s150
      %p152 = scmp.eq.s32.totalorder %s34, 0
      %p153 = por %p151, %p152
      %s154 = ssub.s32 %s35, %s47
      %p155 = scmp.eq.s32.totalorder %s154, 0
      %s157 = sadd.s32 %s156, 1
      %s158 = scalar_select %p155, %s156, %s157
      %p161 = pneg %p155
      %p162 = scmp.eq.s32.totalorder %s28, 7
      %p163 = por %p161, %p162
      %p164 = scmp.ne.s32.totalorder %s156, %s159
      %p165 = scmp.eq.s32.totalorder %s28, 0
      %p166 = por %p164, %p165
      %p167 = scmp.ne.s32.totalorder %s156, %s159
      %p168 = scmp.eq.s32.totalorder %s33, 7
      %p169 = por %p167, %p168
      %p170 = scmp.ne.s32.totalorder %s159, %s160
      %p171 = scmp.eq.s32.totalorder %s33, 0
      %p172 = por %p170, %p171
      %p173 = scmp.ne.s32.totalorder %s159, %s160
      %p174 = scmp.eq.s32.totalorder %s34, 7
      %p175 = por %p173, %p174
      %p177 = scmp.ne.s32.totalorder %s160, %s176
      %p178 = scmp.eq.s32.totalorder %s34, 0
      %p179 = por %p177, %p178
      %s180 = ssub.s32 %s35, %s47
      %s181 = ssub.s32 %s36, %s43
      %s182 = sor.u32 %s180, %s181
      %p183 = scmp.eq.s32.totalorder %s182, 0
      %s185 = sadd.s32 %s184, 1
      %s186 = scalar_select %p183, %s184, %s185
      %p189 = pneg %p183
      %p190 = scmp.eq.s32.totalorder %s28, 7
      %p191 = por %p189, %p190
      %p192 = scmp.ne.s32.totalorder %s184, %s187
      %p193 = scmp.eq.s32.totalorder %s28, 0
      %p194 = por %p192, %p193
      %p195 = scmp.ne.s32.totalorder %s184, %s187
      %p196 = scmp.eq.s32.totalorder %s33, 7
      %p197 = por %p195, %p196
      %p198 = scmp.ne.s32.totalorder %s187, %s188
      %p199 = scmp.eq.s32.totalorder %s33, 0
      %p200 = por %p198, %p199
      %p201 = scmp.ne.s32.totalorder %s187, %s188
      %p202 = scmp.eq.s32.totalorder %s34, 7
      %p203 = por %p201, %p202
      %p205 = scmp.ne.s32.totalorder %s188, %s204
      %p206 = scmp.eq.s32.totalorder %s34, 0
      %p207 = por %p205, %p206
      %s208 = ssub.s32 %s35, %s47
      %s209 = ssub.s32 %s36, %s43
      %s210 = sor.u32 %s208, %s209
      %p211 = scmp.eq.s32.totalorder %s210, 0
      %s213 = sadd.s32 %s212, 1
      %s214 = scalar_select %p211, %s212, %s213
      %p217 = pneg %p211
      %p218 = scmp.eq.s32.totalorder %s28, 7
      %p219 = por %p217, %p218
      %p220 = scmp.ne.s32.totalorder %s212, %s215
      %p221 = scmp.eq.s32.totalorder %s28, 0
      %p222 = por %p220, %p221
      %p223 = scmp.ne.s32.totalorder %s212, %s215
      %p224 = scmp.eq.s32.totalorder %s33, 7
      %p225 = por %p223, %p224
      %p226 = scmp.ne.s32.totalorder %s215, %s216
      %p227 = scmp.eq.s32.totalorder %s33, 0
      %p228 = por %p226, %p227
      %p229 = scmp.ne.s32.totalorder %s215, %s216
      %p230 = scmp.eq.s32.totalorder %s34, 7
      %p231 = por %p229, %p230
      %p233 = scmp.ne.s32.totalorder %s216, %s232
      %p234 = scmp.eq.s32.totalorder %s34, 0
      %p235 = por %p233, %p234
      %p236 = scmp.le.s32.totalorder 1, %s28
      %p237 = scmp.lt.s32.totalorder %s28, 9
      %p238 = pnand %p236, %p237
      %p239 = pneg %p238
      // Predicated region
      $region9: #{tpu_custom_call.1} parent=5 // pred_check
        _
      $region10: #{tpu_custom_call.1} parent=5 // pred_check_branch
        %241 = sbr.rel (%p238) target = $region12
      $region11: #{tpu_custom_call.1} parent=5 // pred_region
        %s242 = ssub.s32 %s28, 1
      $region12: #{tpu_custom_call.1} parent=5 // pred_fallthru
        _
      %p243 = scmp.lt.s32.totalorder %s28, 8
      // Predicated region
      $region13: #{tpu_custom_call.1} parent=5 // pred_check
        %p244 = pneg %p243
      $region14: #{tpu_custom_call.1} parent=5 // pred_check_branch
        %246 = sbr.rel (%p244) target = $region16
      $region15: #{tpu_custom_call.1} parent=5 // pred_region
        // Predicated region
        $region17: #{tpu_custom_call.1} parent=15 // pred_check
          %p247 = pneg %p62
        $region18: #{tpu_custom_call.1} parent=15 // pred_check_branch
          %249 = sbr.rel (%p247) target = $region20
        $region19: #{tpu_custom_call.1} parent=15 // pred_region
          #allocation15 [shape = 'u32[6]{0}', space=smem, size = 0x18, scoped, tag = 'DMA stride descriptor']
          %s250 = sand.u32 %s52, 1
          %s251 = scalar_lea.sflag [#allocation3], %s250
          %s252 = sand.u32 %s52, 1
          %s253 = smul.addr %s252, 768
          %s254 = scalar_lea.vmem [#allocation2], %s253
          %s255 = smul.u32 16, %s36
          %s256 = smul.u32 6, %s35
          %s258 = ssub.s32 12288, 12288
          %259 = vsyncadd %s251, %s258
          %s260 = smul.addr %s256, 2
          %s261 = smul.addr %s255, 48
          %s262 = sadd.s32 %s260, %s261
          %s263 = smul.addr %s262, 64
          %s264 = scalar_lea.hbm %s0, %s263
          %s266 = sshll.u32 1, 14
          %s267 = sxor.u32 4294967295, %s266
          %s269 = sld [smem:[#allocation0]]
          %s270 = sadd.s32 2, %s269
          %s272 = sshll.u32 7, 26
          %s273 = sxor.u32 4294967295, %s272
          %s274 = sand.u32 0, %s273
          %s275 = sshll.u32 %s270, 26
          %s276 = sor.u32 %s274, %s275
          %s277 = sshll.u32 %s254, 4
          %s278 = int_to_ptr.vmem [resolvable:$true] %s277
          %284 = sst [smem:[#allocation15]] 3072
          %s285 = scalar_lea.smem [#allocation15], 1
          %286 = sst [smem:[%s285]] 768
          %s287 = scalar_lea.smem [#allocation15], 2
          %288 = sst [smem:[%s287]] 6
          %s289 = scalar_lea.smem [#allocation15], 3
          %290 = sst [smem:[%s289]] 128
          %s291 = scalar_lea.smem [#allocation15], 4
          %292 = sst [smem:[%s291]] 128
          %s293 = scalar_lea.smem [#allocation15], 5
          %294 = sst [smem:[%s293]] 8
          %296 = dma.general %s264, 12288, %s278, %s251, 131072, [#allocation15], %s276, 0
        $region20: #{tpu_custom_call.1} parent=15 // pred_fallthru
          _
        // Predicated region
        $region21: #{tpu_custom_call.1} parent=15 // pred_check
          %p297 = pneg %p88
        $region22: #{tpu_custom_call.1} parent=15 // pred_check_branch
          %299 = sbr.rel (%p297) target = $region24
        $region23: #{tpu_custom_call.1} parent=15 // pred_region
          %s300 = sand.u32 %s28, 1
          %s301 = scalar_lea.sflag [#allocation6], %s300
          %s302 = sand.u32 %s78, 1
          %s303 = smul.addr %s302, 256
          %s304 = scalar_lea.vmem [#allocation5], %s303
          %s306 = ssub.s32 4096, 4096
          %307 = vsyncadd %s301, %s306
          %s308 = smul.addr %s35, 64
          %s309 = smul.addr %s308, 64
          %s310 = scalar_lea.hbm %s1, %s309
          %s311 = sshll.u32 %s304, 4
          %s312 = int_to_ptr.vmem [resolvable:$true] %s311
          %317 = dma.hbm_to_vmem [thread:$0]  %s310, 4096, %s312, %s301, 128, 128, 8
        $region24: #{tpu_custom_call.1} parent=15 // pred_fallthru
          _
        // Predicated region
        $region25: #{tpu_custom_call.1} parent=15 // pred_check
          %p318 = pneg %p114
        $region26: #{tpu_custom_call.1} parent=15 // pred_check_branch
          %320 = sbr.rel (%p318) target = $region28
        $region27: #{tpu_custom_call.1} parent=15 // pred_region
          %s321 = sand.u32 %s28, 1
          %s322 = scalar_lea.sflag [#allocation6], %s321
          %s323 = sand.u32 %s104, 1
          %s324 = smul.addr %s323, 2
          %s325 = scalar_lea.vmem [#allocation7], %s324
          %s327 = ssub.s32 32, 32
          %328 = vsyncadd %s322, %s327
          %s329 = smul.addr %s35, 2
          %s330 = smul.addr %s329, 16
          %s331 = scalar_lea.hbm %s2, %s330
          %s333 = sshll.u32 %s325, 4
          %s334 = int_to_ptr.vmem [resolvable:$true] %s333
          %336 = dma.hbm_to_vmem [thread:$0]  %s331, 32, %s334, %s322
        $region28: #{tpu_custom_call.1} parent=15 // pred_fallthru
          _
        // Predicated region
        $region29: #{tpu_custom_call.1} parent=15 // pred_check
          %p337 = pneg %p140
        $region30: #{tpu_custom_call.1} parent=15 // pred_check_branch
          %339 = sbr.rel (%p337) target = $region32
        $region31: #{tpu_custom_call.1} parent=15 // pred_region
          %s340 = sand.u32 %s28, 1
          %s341 = scalar_lea.sflag [#allocation9], %s340
          %s342 = sand.u32 %s130, 1
          %s343 = smul.addr %s342, 128
          %s344 = scalar_lea.vmem [#allocation8], %s343
          %s346 = ssub.s32 2048, 2048
          %347 = vsyncadd %s341, %s346
          %s348 = smul.addr %s35, 32
          %s349 = smul.addr %s348, 64
          %s350 = scalar_lea.hbm %s3, %s349
          %s351 = sshll.u32 %s344, 4
          %s352 = int_to_ptr.vmem [resolvable:$true] %s351
          %357 = dma.hbm_to_vmem [thread:$0]  %s350, 2048, %s352, %s341, 64, 64, 4
        $region32: #{tpu_custom_call.1} parent=15 // pred_fallthru
          _
        // Predicated region
        $region33: #{tpu_custom_call.1} parent=15 // pred_check
          %p358 = pneg %p166
        $region34: #{tpu_custom_call.1} parent=15 // pred_check_branch
          %360 = sbr.rel (%p358) target = $region36
        $region35: #{tpu_custom_call.1} parent=15 // pred_region
          %s361 = sand.u32 %s28, 1
          %s362 = scalar_lea.sflag [#allocation9], %s361
          %s363 = sand.u32 %s156, 1
          %s364 = scalar_lea.vmem [#allocation10], %s363
          %s366 = ssub.s32 16, 16
          %367 = vsyncadd %s362, %s366
          %s368 = smul.addr %s35, 16
          %s369 = scalar_lea.hbm %s4, %s368
          %s371 = sshll.u32 %s364, 4
          %s372 = int_to_ptr.vmem [resolvable:$true] %s371
          %374 = dma.hbm_to_vmem [thread:$0]  %s369, 16, %s372, %s362
        $region36: #{tpu_custom_call.1} parent=15 // pred_fallthru
          _
      $region16: #{tpu_custom_call.1} parent=5 // pred_fallthru
        _
      %p375 = scmp.le.s32.totalorder 1, %s28
      %p376 = scmp.lt.s32.totalorder %s28, 9
      %p377 = pnand %p375, %p376
      %p378 = pneg %p377
      // Predicated region
      $region37: #{tpu_custom_call.1} parent=5 // pred_check
        _
      $region38: #{tpu_custom_call.1} parent=5 // pred_check_branch
        %380 = sbr.rel (%p377) target = $region40
      $region39: #{tpu_custom_call.1} parent=5 // pred_region
        %s381 = ssub.s32 %s28, 1
        %s382 = sand.u32 %s55, 1
        %s383 = scalar_lea.sflag [#allocation3], %s382
        %s384 = sand.u32 %s55, 1
        %s385 = smul.addr %s384, 768
        %s386 = scalar_lea.vmem [#allocation2], %s385
        // Predicated region
        $region41: #{tpu_custom_call.1} parent=39 // pred_check
          %p387 = pneg %p68
        $region42: #{tpu_custom_call.1} parent=39 // pred_check_branch
          %389 = sbr.rel (%p387) target = $region44
        $region43: #{tpu_custom_call.1} parent=39 // pred_region
          %390 = dma.done %s383, 12288
        $region44: #{tpu_custom_call.1} parent=39 // pred_fallthru
          _
        %s391 = sand.u32 %s33, 1
        %s392 = scalar_lea.sflag [#allocation6], %s391
        %s393 = sand.u32 %s81, 1
        %s394 = smul.addr %s393, 256
        %s395 = scalar_lea.vmem [#allocation5], %s394
        // Predicated region
        $region45: #{tpu_custom_call.1} parent=39 // pred_check
          %p396 = pneg %p94
        $region46: #{tpu_custom_call.1} parent=39 // pred_check_branch
          %398 = sbr.rel (%p396) target = $region48
        $region47: #{tpu_custom_call.1} parent=39 // pred_region
          %399 = dma.done %s392, 4096
        $region48: #{tpu_custom_call.1} parent=39 // pred_fallthru
          _
        %s400 = sand.u32 %s33, 1
        %s401 = scalar_lea.sflag [#allocation6], %s400
        %s402 = sand.u32 %s107, 1
        %s403 = smul.addr %s402, 2
        %s404 = scalar_lea.vmem [#allocation7], %s403
        // Predicated region
        $region49: #{tpu_custom_call.1} parent=39 // pred_check
          %p405 = pneg %p120
        $region50: #{tpu_custom_call.1} parent=39 // pred_check_branch
          %407 = sbr.rel (%p405) target = $region52
        $region51: #{tpu_custom_call.1} parent=39 // pred_region
          %408 = dma.done %s401, 32
        $region52: #{tpu_custom_call.1} parent=39 // pred_fallthru
          _
        %s409 = sand.u32 %s33, 1
        %s410 = scalar_lea.sflag [#allocation9], %s409
        %s411 = sand.u32 %s133, 1
        %s412 = smul.addr %s411, 128
        %s413 = scalar_lea.vmem [#allocation8], %s412
        // Predicated region
        $region53: #{tpu_custom_call.1} parent=39 // pred_check
          %p414 = pneg %p146
        $region54: #{tpu_custom_call.1} parent=39 // pred_check_branch
          %416 = sbr.rel (%p414) target = $region56
        $region55: #{tpu_custom_call.1} parent=39 // pred_region
          %417 = dma.done %s410, 2048
        $region56: #{tpu_custom_call.1} parent=39 // pred_fallthru
          _
        %s418 = sand.u32 %s33, 1
        %s419 = scalar_lea.sflag [#allocation9], %s418
        %s420 = sand.u32 %s159, 1
        %s421 = scalar_lea.vmem [#allocation10], %s420
        // Predicated region
        $region57: #{tpu_custom_call.1} parent=39 // pred_check
          %p422 = pneg %p172
        $region58: #{tpu_custom_call.1} parent=39 // pred_check_branch
          %424 = sbr.rel (%p422) target = $region60
        $region59: #{tpu_custom_call.1} parent=39 // pred_region
          %425 = dma.done %s419, 16
        $region60: #{tpu_custom_call.1} parent=39 // pred_fallthru
          _
        %s426 = sand.u32 %s55, 1
        %s427 = scalar_lea.sflag [#allocation3], %s426
        %s428 = sand.u32 %s55, 1
        %s429 = smul.addr %s428, 768
        %s430 = scalar_lea.vmem [#allocation2], %s429
        %p431 = pneg %p68
        %p432 = pneg %p65
        %s433 = sand.u32 %s33, 1
        %s434 = scalar_lea.sflag [#allocation6], %s433
        %s435 = sand.u32 %s81, 1
        %s436 = smul.addr %s435, 256
        %s437 = scalar_lea.vmem [#allocation5], %s436
        %p438 = pneg %p94
        %p439 = pneg %p91
        %s440 = sand.u32 %s33, 1
        %s441 = scalar_lea.sflag [#allocation6], %s440
        %s442 = sand.u32 %s107, 1
        %s443 = smul.addr %s442, 2
        %s444 = scalar_lea.vmem [#allocation7], %s443
        %p445 = pneg %p120
        %p446 = pneg %p117
        %s447 = sand.u32 %s33, 1
        %s448 = scalar_lea.sflag [#allocation9], %s447
        %s449 = sand.u32 %s133, 1
        %s450 = smul.addr %s449, 128
        %s451 = scalar_lea.vmem [#allocation8], %s450
        %p452 = pneg %p146
        %p453 = pneg %p143
        %s454 = sand.u32 %s33, 1
        %s455 = scalar_lea.sflag [#allocation9], %s454
        %s456 = sand.u32 %s159, 1
        %s457 = scalar_lea.vmem [#allocation10], %s456
        %p458 = pneg %p172
        %p459 = pneg %p169
        %p460 = pneg %p200
        %p461 = pneg %p197
        %s462 = sand.u32 %s187, 1
        %s463 = scalar_lea.sflag [#allocation4], %s462
        %s464 = sand.u32 %s187, 1
        %s465 = smul.addr %s464, 32
        %s466 = scalar_lea.vmem [#allocation11], %s465
        %p467 = pneg %p228
        %p468 = pneg %p225
        %s469 = sand.u32 %s215, 1
        %s470 = scalar_lea.sflag [#allocation13], %s469
        %s471 = sand.u32 %s215, 1
        %s472 = smul.addr %s471, 16
        %s473 = scalar_lea.vmem [#allocation12], %s472
        %s474 = smul.u32 16, %s38
        %s475 = smul.u32 6, %s37
        %s476 = smul.u32 2, %s38
        %s477 = smul.u32 2, %s38
        %v479 = vld [vmem:[%s386] sm:$0xff]
        %v480 = vld [vmem:[%s386 + $0x8] sm:$0xff]
        %v481 = vld [vmem:[%s386 + $0x10] sm:$0xff]
        %v482 = vld [vmem:[%s386 + $0x18] sm:$0xff]
        %v483 = vld [vmem:[%s386 + $0x20] sm:$0xff]
        %v484 = vld [vmem:[%s386 + $0x28] sm:$0xff]
        %v485 = vld [vmem:[%s386 + $0x30] sm:$0xff]
        %v486 = vld [vmem:[%s386 + $0x38] sm:$0xff]
        %v487 = vld [vmem:[%s386 + $0x40] sm:$0xff]
        %v488 = vld [vmem:[%s386 + $0x48] sm:$0xff]
        %v489 = vld [vmem:[%s386 + $0x50] sm:$0xff]
        %v490 = vld [vmem:[%s386 + $0x58] sm:$0xff]
        %v491 = vld [vmem:[%s386 + $0x60] sm:$0xff]
        %v492 = vld [vmem:[%s386 + $0x68] sm:$0xff]
        %v493 = vld [vmem:[%s386 + $0x70] sm:$0xff]
        %v494 = vld [vmem:[%s386 + $0x78] sm:$0xff]
        %v495 = vld [vmem:[%s386 + $0x80] sm:$0xff]
        %v496 = vld [vmem:[%s386 + $0x88] sm:$0xff]
        %v497 = vld [vmem:[%s386 + $0x90] sm:$0xff]
        %v498 = vld [vmem:[%s386 + $0x98] sm:$0xff]
        %v499 = vld [vmem:[%s386 + $0xa0] sm:$0xff]
        %v500 = vld [vmem:[%s386 + $0xa8] sm:$0xff]
        %v501 = vld [vmem:[%s386 + $0xb0] sm:$0xff]
        %v502 = vld [vmem:[%s386 + $0xb8] sm:$0xff]
        %v503 = vld [vmem:[%s386 + $0xc0] sm:$0xff]
        %v504 = vld [vmem:[%s386 + $0xc8] sm:$0xff]
        %v505 = vld [vmem:[%s386 + $0xd0] sm:$0xff]
        %v506 = vld [vmem:[%s386 + $0xd8] sm:$0xff]
        %v507 = vld [vmem:[%s386 + $0xe0] sm:$0xff]
        %v508 = vld [vmem:[%s386 + $0xe8] sm:$0xff]
        %v509 = vld [vmem:[%s386 + $0xf0] sm:$0xff]
        %v510 = vld [vmem:[%s386 + $0xf8] sm:$0xff]
        %v511 = vld [vmem:[%s386 + $0x100] sm:$0xff]
        %v512 = vld [vmem:[%s386 + $0x108] sm:$0xff]
        %v513 = vld [vmem:[%s386 + $0x110] sm:$0xff]
        %v514 = vld [vmem:[%s386 + $0x118] sm:$0xff]
        %v515 = vld [vmem:[%s386 + $0x120] sm:$0xff]
        %v516 = vld [vmem:[%s386 + $0x128] sm:$0xff]
        %v517 = vld [vmem:[%s386 + $0x130] sm:$0xff]
        %v518 = vld [vmem:[%s386 + $0x138] sm:$0xff]
        %v519 = vld [vmem:[%s386 + $0x140] sm:$0xff]
        %v520 = vld [vmem:[%s386 + $0x148] sm:$0xff]
        %v521 = vld [vmem:[%s386 + $0x150] sm:$0xff]
        %v522 = vld [vmem:[%s386 + $0x158] sm:$0xff]
        %v523 = vld [vmem:[%s386 + $0x160] sm:$0xff]
        %v524 = vld [vmem:[%s386 + $0x168] sm:$0xff]
        %v525 = vld [vmem:[%s386 + $0x170] sm:$0xff]
        %v526 = vld [vmem:[%s386 + $0x178] sm:$0xff]
        %v527 = vld [vmem:[%s386 + $0x180] sm:$0xff]
        %v528 = vld [vmem:[%s386 + $0x188] sm:$0xff]
        %v529 = vld [vmem:[%s386 + $0x190] sm:$0xff]
        %v530 = vld [vmem:[%s386 + $0x198] sm:$0xff]
        %v531 = vld [vmem:[%s386 + $0x1a0] sm:$0xff]
        %v532 = vld [vmem:[%s386 + $0x1a8] sm:$0xff]
        %v533 = vld [vmem:[%s386 + $0x1b0] sm:$0xff]
        %v534 = vld [vmem:[%s386 + $0x1b8] sm:$0xff]
        %v535 = vld [vmem:[%s386 + $0x1c0] sm:$0xff]
        %v536 = vld [vmem:[%s386 + $0x1c8] sm:$0xff]
        %v537 = vld [vmem:[%s386 + $0x1d0] sm:$0xff]
        %v538 = vld [vmem:[%s386 + $0x1d8] sm:$0xff]
        %v539 = vld [vmem:[%s386 + $0x1e0] sm:$0xff]
        %v540 = vld [vmem:[%s386 + $0x1e8] sm:$0xff]
        %v541 = vld [vmem:[%s386 + $0x1f0] sm:$0xff]
        %v542 = vld [vmem:[%s386 + $0x1f8] sm:$0xff]
        %v543 = vld [vmem:[%s386 + $0x200] sm:$0xff]
        %v544 = vld [vmem:[%s386 + $0x208] sm:$0xff]
        %v545 = vld [vmem:[%s386 + $0x210] sm:$0xff]
        %v546 = vld [vmem:[%s386 + $0x218] sm:$0xff]
        %v547 = vld [vmem:[%s386 + $0x220] sm:$0xff]
        %v548 = vld [vmem:[%s386 + $0x228] sm:$0xff]
        %v549 = vld [vmem:[%s386 + $0x230] sm:$0xff]
        %v550 = vld [vmem:[%s386 + $0x238] sm:$0xff]
        %v551 = vld [vmem:[%s386 + $0x240] sm:$0xff]
        %v552 = vld [vmem:[%s386 + $0x248] sm:$0xff]
        %v553 = vld [vmem:[%s386 + $0x250] sm:$0xff]
        %v554 = vld [vmem:[%s386 + $0x258] sm:$0xff]
        %v555 = vld [vmem:[%s386 + $0x260] sm:$0xff]
        %v556 = vld [vmem:[%s386 + $0x268] sm:$0xff]
        %v557 = vld [vmem:[%s386 + $0x270] sm:$0xff]
        %v558 = vld [vmem:[%s386 + $0x278] sm:$0xff]
        %v559 = vld [vmem:[%s386 + $0x280] sm:$0xff]
        %v560 = vld [vmem:[%s386 + $0x288] sm:$0xff]
        %v561 = vld [vmem:[%s386 + $0x290] sm:$0xff]
        %v562 = vld [vmem:[%s386 + $0x298] sm:$0xff]
        %v563 = vld [vmem:[%s386 + $0x2a0] sm:$0xff]
        %v564 = vld [vmem:[%s386 + $0x2a8] sm:$0xff]
        %v565 = vld [vmem:[%s386 + $0x2b0] sm:$0xff]
        %v566 = vld [vmem:[%s386 + $0x2b8] sm:$0xff]
        %v567 = vld [vmem:[%s386 + $0x2c0] sm:$0xff]
        %v568 = vld [vmem:[%s386 + $0x2c8] sm:$0xff]
        %v569 = vld [vmem:[%s386 + $0x2d0] sm:$0xff]
        %v570 = vld [vmem:[%s386 + $0x2d8] sm:$0xff]
        %v571 = vld [vmem:[%s386 + $0x2e0] sm:$0xff]
        %v572 = vld [vmem:[%s386 + $0x2e8] sm:$0xff]
        %v573 = vld [vmem:[%s386 + $0x2f0] sm:$0xff]
        %v574 = vld [vmem:[%s386 + $0x2f8] sm:$0xff]
        %v575 = vunpack.c.l.bf16 %v479
        %v576 = vunpack.c.h.bf16 %v479
        %v577 = vunpack.c.l.bf16 %v480
        %v578 = vunpack.c.h.bf16 %v480
        %v579 = vunpack.c.l.bf16 %v481
        %v580 = vunpack.c.h.bf16 %v481
        %v581 = vunpack.c.l.bf16 %v482
        %v582 = vunpack.c.h.bf16 %v482
        %v583 = vunpack.c.l.bf16 %v483
        %v584 = vunpack.c.h.bf16 %v483
        %v585 = vunpack.c.l.bf16 %v484
        %v586 = vunpack.c.h.bf16 %v484
        %v587 = vunpack.c.l.bf16 %v485
        %v588 = vunpack.c.h.bf16 %v485
        %v589 = vunpack.c.l.bf16 %v486
        %v590 = vunpack.c.h.bf16 %v486
        %v591 = vunpack.c.l.bf16 %v487
        %v592 = vunpack.c.h.bf16 %v487
        %v593 = vunpack.c.l.bf16 %v488
        %v594 = vunpack.c.h.bf16 %v488
        %v595 = vunpack.c.l.bf16 %v489
        %v596 = vunpack.c.h.bf16 %v489
        %v597 = vunpack.c.l.bf16 %v490
        %v598 = vunpack.c.h.bf16 %v490
        %v599 = vunpack.c.l.bf16 %v491
        %v600 = vunpack.c.h.bf16 %v491
        %v601 = vunpack.c.l.bf16 %v492
        %v602 = vunpack.c.h.bf16 %v492
        %v603 = vunpack.c.l.bf16 %v493
        %v604 = vunpack.c.h.bf16 %v493
        %v605 = vunpack.c.l.bf16 %v494
        %v606 = vunpack.c.h.bf16 %v494
        %v607 = vunpack.c.l.bf16 %v495
        %v608 = vunpack.c.h.bf16 %v495
        %v609 = vunpack.c.l.bf16 %v496
        %v610 = vunpack.c.h.bf16 %v496
        %v611 = vunpack.c.l.bf16 %v497
        %v612 = vunpack.c.h.bf16 %v497
        %v613 = vunpack.c.l.bf16 %v498
        %v614 = vunpack.c.h.bf16 %v498
        %v615 = vunpack.c.l.bf16 %v499
        %v616 = vunpack.c.h.bf16 %v499
        %v617 = vunpack.c.l.bf16 %v500
        %v618 = vunpack.c.h.bf16 %v500
        %v619 = vunpack.c.l.bf16 %v501
        %v620 = vunpack.c.h.bf16 %v501
        %v621 = vunpack.c.l.bf16 %v502
        %v622 = vunpack.c.h.bf16 %v502
        %v623 = vunpack.c.l.bf16 %v503
        %v624 = vunpack.c.h.bf16 %v503
        %v625 = vunpack.c.l.bf16 %v504
        %v626 = vunpack.c.h.bf16 %v504
        %v627 = vunpack.c.l.bf16 %v505
        %v628 = vunpack.c.h.bf16 %v505
        %v629 = vunpack.c.l.bf16 %v506
        %v630 = vunpack.c.h.bf16 %v506
        %v631 = vunpack.c.l.bf16 %v507
        %v632 = vunpack.c.h.bf16 %v507
        %v633 = vunpack.c.l.bf16 %v508
        %v634 = vunpack.c.h.bf16 %v508
        %v635 = vunpack.c.l.bf16 %v509
        %v636 = vunpack.c.h.bf16 %v509
        %v637 = vunpack.c.l.bf16 %v510
        %v638 = vunpack.c.h.bf16 %v510
        %v639 = vunpack.c.l.bf16 %v511
        %v640 = vunpack.c.h.bf16 %v511
        %v641 = vunpack.c.l.bf16 %v512
        %v642 = vunpack.c.h.bf16 %v512
        %v643 = vunpack.c.l.bf16 %v513
        %v644 = vunpack.c.h.bf16 %v513
        %v645 = vunpack.c.l.bf16 %v514
        %v646 = vunpack.c.h.bf16 %v514
        %v647 = vunpack.c.l.bf16 %v515
        %v648 = vunpack.c.h.bf16 %v515
        %v649 = vunpack.c.l.bf16 %v516
        %v650 = vunpack.c.h.bf16 %v516
        %v651 = vunpack.c.l.bf16 %v517
        %v652 = vunpack.c.h.bf16 %v517
        %v653 = vunpack.c.l.bf16 %v518
        %v654 = vunpack.c.h.bf16 %v518
        %v655 = vunpack.c.l.bf16 %v519
        %v656 = vunpack.c.h.bf16 %v519
        %v657 = vunpack.c.l.bf16 %v520
        %v658 = vunpack.c.h.bf16 %v520
        %v659 = vunpack.c.l.bf16 %v521
        %v660 = vunpack.c.h.bf16 %v521
        %v661 = vunpack.c.l.bf16 %v522
        %v662 = vunpack.c.h.bf16 %v522
        %v663 = vunpack.c.l.bf16 %v523
        %v664 = vunpack.c.h.bf16 %v523
        %v665 = vunpack.c.l.bf16 %v524
        %v666 = vunpack.c.h.bf16 %v524
        %v667 = vunpack.c.l.bf16 %v525
        %v668 = vunpack.c.h.bf16 %v525
        %v669 = vunpack.c.l.bf16 %v526
        %v670 = vunpack.c.h.bf16 %v526
        %v671 = vunpack.c.l.bf16 %v527
        %v672 = vunpack.c.h.bf16 %v527
        %v673 = vunpack.c.l.bf16 %v528
        %v674 = vunpack.c.h.bf16 %v528
        %v675 = vunpack.c.l.bf16 %v529
        %v676 = vunpack.c.h.bf16 %v529
        %v677 = vunpack.c.l.bf16 %v530
        %v678 = vunpack.c.h.bf16 %v530
        %v679 = vunpack.c.l.bf16 %v531
        %v680 = vunpack.c.h.bf16 %v531
        %v681 = vunpack.c.l.bf16 %v532
        %v682 = vunpack.c.h.bf16 %v532
        %v683 = vunpack.c.l.bf16 %v533
        %v684 = vunpack.c.h.bf16 %v533
        %v685 = vunpack.c.l.bf16 %v534
        %v686 = vunpack.c.h.bf16 %v534
        %v687 = vunpack.c.l.bf16 %v535
        %v688 = vunpack.c.h.bf16 %v535
        %v689 = vunpack.c.l.bf16 %v536
        %v690 = vunpack.c.h.bf16 %v536
        %v691 = vunpack.c.l.bf16 %v537
        %v692 = vunpack.c.h.bf16 %v537
        %v693 = vunpack.c.l.bf16 %v538
        %v694 = vunpack.c.h.bf16 %v538
        %v695 = vunpack.c.l.bf16 %v539
        %v696 = vunpack.c.h.bf16 %v539
        %v697 = vunpack.c.l.bf16 %v540
        %v698 = vunpack.c.h.bf16 %v540
        %v699 = vunpack.c.l.bf16 %v541
        %v700 = vunpack.c.h.bf16 %v541
        %v701 = vunpack.c.l.bf16 %v542
        %v702 = vunpack.c.h.bf16 %v542
        %v703 = vunpack.c.l.bf16 %v543
        %v704 = vunpack.c.h.bf16 %v543
        %v705 = vunpack.c.l.bf16 %v544
        %v706 = vunpack.c.h.bf16 %v544
        %v707 = vunpack.c.l.bf16 %v545
        %v708 = vunpack.c.h.bf16 %v545
        %v709 = vunpack.c.l.bf16 %v546
        %v710 = vunpack.c.h.bf16 %v546
        %v711 = vunpack.c.l.bf16 %v547
        %v712 = vunpack.c.h.bf16 %v547
        %v713 = vunpack.c.l.bf16 %v548
        %v714 = vunpack.c.h.bf16 %v548
        %v715 = vunpack.c.l.bf16 %v549
        %v716 = vunpack.c.h.bf16 %v549
        %v717 = vunpack.c.l.bf16 %v550
        %v718 = vunpack.c.h.bf16 %v550
        %v719 = vunpack.c.l.bf16 %v551
        %v720 = vunpack.c.h.bf16 %v551
        %v721 = vunpack.c.l.bf16 %v552
        %v722 = vunpack.c.h.bf16 %v552
        %v723 = vunpack.c.l.bf16 %v553
        %v724 = vunpack.c.h.bf16 %v553
        %v725 = vunpack.c.l.bf16 %v554
        %v726 = vunpack.c.h.bf16 %v554
        %v727 = vunpack.c.l.bf16 %v555
        %v728 = vunpack.c.h.bf16 %v555
        %v729 = vunpack.c.l.bf16 %v556
        %v730 = vunpack.c.h.bf16 %v556
        %v731 = vunpack.c.l.bf16 %v557
        %v732 = vunpack.c.h.bf16 %v557
        %v733 = vunpack.c.l.bf16 %v558
        %v734 = vunpack.c.h.bf16 %v558
        %v735 = vunpack.c.l.bf16 %v559
        %v736 = vunpack.c.h.bf16 %v559
        %v737 = vunpack.c.l.bf16 %v560
        %v738 = vunpack.c.h.bf16 %v560
        %v739 = vunpack.c.l.bf16 %v561
        %v740 = vunpack.c.h.bf16 %v561
        %v741 = vunpack.c.l.bf16 %v562
        %v742 = vunpack.c.h.bf16 %v562
        %v743 = vunpack.c.l.bf16 %v563
        %v744 = vunpack.c.h.bf16 %v563
        %v745 = vunpack.c.l.bf16 %v564
        %v746 = vunpack.c.h.bf16 %v564
        %v747 = vunpack.c.l.bf16 %v565
        %v748 = vunpack.c.h.bf16 %v565
        %v749 = vunpack.c.l.bf16 %v566
        %v750 = vunpack.c.h.bf16 %v566
        %v751 = vunpack.c.l.bf16 %v567
        %v752 = vunpack.c.h.bf16 %v567
        %v753 = vunpack.c.l.bf16 %v568
        %v754 = vunpack.c.h.bf16 %v568
        %v755 = vunpack.c.l.bf16 %v569
        %v756 = vunpack.c.h.bf16 %v569
        %v757 = vunpack.c.l.bf16 %v570
        %v758 = vunpack.c.h.bf16 %v570
        %v759 = vunpack.c.l.bf16 %v571
        %v760 = vunpack.c.h.bf16 %v571
        %v761 = vunpack.c.l.bf16 %v572
        %v762 = vunpack.c.h.bf16 %v572
        %v763 = vunpack.c.l.bf16 %v573
        %v764 = vunpack.c.h.bf16 %v573
        %v765 = vunpack.c.l.bf16 %v574
        %v766 = vunpack.c.h.bf16 %v574
        %v767 = vadd.f32 %v575, %v577
        %v768 = vadd.f32 %v767, %v579
        %v769 = vadd.f32 %v768, %v581
        %v770 = vadd.f32 %v769, %v583
        %v771 = vadd.f32 %v770, %v585
        %v772 = vrot.slane %v771, 4
        %v773 = vadd.f32 %v771, %v772
        %v774 = vrot.slane %v773, 2
        %v775 = vadd.f32 %v773, %v774
        %v776 = vrot.slane %v775, 1
        %v777 = vadd.f32 %v775, %v776
        %v778 = vadd.f32 %v576, %v578
        %v779 = vadd.f32 %v778, %v580
        %v780 = vadd.f32 %v779, %v582
        %v781 = vadd.f32 %v780, %v584
        %v782 = vadd.f32 %v781, %v586
        %v783 = vrot.slane %v782, 4
        %v784 = vadd.f32 %v782, %v783
        %v785 = vrot.slane %v784, 2
        %v786 = vadd.f32 %v784, %v785
        %v787 = vrot.slane %v786, 1
        %v788 = vadd.f32 %v786, %v787
        %v789 = vadd.f32 %v587, %v589
        %v790 = vadd.f32 %v789, %v591
        %v791 = vadd.f32 %v790, %v593
        %v792 = vadd.f32 %v791, %v595
        %v793 = vadd.f32 %v792, %v597
        %v794 = vrot.slane %v793, 4
        %v795 = vadd.f32 %v793, %v794
        %v796 = vrot.slane %v795, 2
        %v797 = vadd.f32 %v795, %v796
        %v798 = vrot.slane %v797, 1
        %v799 = vadd.f32 %v797, %v798
        %v800 = vadd.f32 %v588, %v590
        %v801 = vadd.f32 %v800, %v592
        %v802 = vadd.f32 %v801, %v594
        %v803 = vadd.f32 %v802, %v596
        %v804 = vadd.f32 %v803, %v598
        %v805 = vrot.slane %v804, 4
        %v806 = vadd.f32 %v804, %v805
        %v807 = vrot.slane %v806, 2
        %v808 = vadd.f32 %v806, %v807
        %v809 = vrot.slane %v808, 1
        %v810 = vadd.f32 %v808, %v809
        %v811 = vadd.f32 %v599, %v601
        %v812 = vadd.f32 %v811, %v603
        %v813 = vadd.f32 %v812, %v605
        %v814 = vadd.f32 %v813, %v607
        %v815 = vadd.f32 %v814, %v609
        %v816 = vrot.slane %v815, 4
        %v817 = vadd.f32 %v815, %v816
        %v818 = vrot.slane %v817, 2
        %v819 = vadd.f32 %v817, %v818
        %v820 = vrot.slane %v819, 1
        %v821 = vadd.f32 %v819, %v820
        %v822 = vadd.f32 %v600, %v602
        %v823 = vadd.f32 %v822, %v604
        %v824 = vadd.f32 %v823, %v606
        %v825 = vadd.f32 %v824, %v608
        %v826 = vadd.f32 %v825, %v610
        %v827 = vrot.slane %v826, 4
        %v828 = vadd.f32 %v826, %v827
        %v829 = vrot.slane %v828, 2
        %v830 = vadd.f32 %v828, %v829
        %v831 = vrot.slane %v830, 1
        %v832 = vadd.f32 %v830, %v831
        %v833 = vadd.f32 %v611, %v613
        %v834 = vadd.f32 %v833, %v615
        %v835 = vadd.f32 %v834, %v617
        %v836 = vadd.f32 %v835, %v619
        %v837 = vadd.f32 %v836, %v621
        %v838 = vrot.slane %v837, 4
        %v839 = vadd.f32 %v837, %v838
        %v840 = vrot.slane %v839, 2
        %v841 = vadd.f32 %v839, %v840
        %v842 = vrot.slane %v841, 1
        %v843 = vadd.f32 %v841, %v842
        %v844 = vadd.f32 %v612, %v614
        %v845 = vadd.f32 %v844, %v616
        %v846 = vadd.f32 %v845, %v618
        %v847 = vadd.f32 %v846, %v620
        %v848 = vadd.f32 %v847, %v622
        %v849 = vrot.slane %v848, 4
        %v850 = vadd.f32 %v848, %v849
        %v851 = vrot.slane %v850, 2
        %v852 = vadd.f32 %v850, %v851
        %v853 = vrot.slane %v852, 1
        %v854 = vadd.f32 %v852, %v853
        %v855 = vadd.f32 %v623, %v625
        %v856 = vadd.f32 %v855, %v627
        %v857 = vadd.f32 %v856, %v629
        %v858 = vadd.f32 %v857, %v631
        %v859 = vadd.f32 %v858, %v633
        %v860 = vrot.slane %v859, 4
        %v861 = vadd.f32 %v859, %v860
        %v862 = vrot.slane %v861, 2
        %v863 = vadd.f32 %v861, %v862
        %v864 = vrot.slane %v863, 1
        %v865 = vadd.f32 %v863, %v864
        %v866 = vadd.f32 %v624, %v626
        %v867 = vadd.f32 %v866, %v628
        %v868 = vadd.f32 %v867, %v630
        %v869 = vadd.f32 %v868, %v632
        %v870 = vadd.f32 %v869, %v634
        %v871 = vrot.slane %v870, 4
        %v872 = vadd.f32 %v870, %v871
        %v873 = vrot.slane %v872, 2
        %v874 = vadd.f32 %v872, %v873
        %v875 = vrot.slane %v874, 1
        %v876 = vadd.f32 %v874, %v875
        %v877 = vadd.f32 %v635, %v637
        %v878 = vadd.f32 %v877, %v639
        %v879 = vadd.f32 %v878, %v641
        %v880 = vadd.f32 %v879, %v643
        %v881 = vadd.f32 %v880, %v645
        %v882 = vrot.slane %v881, 4
        %v883 = vadd.f32 %v881, %v882
        %v884 = vrot.slane %v883, 2
        %v885 = vadd.f32 %v883, %v884
        %v886 = vrot.slane %v885, 1
        %v887 = vadd.f32 %v885, %v886
        %v888 = vadd.f32 %v636, %v638
        %v889 = vadd.f32 %v888, %v640
        %v890 = vadd.f32 %v889, %v642
        %v891 = vadd.f32 %v890, %v644
        %v892 = vadd.f32 %v891, %v646
        %v893 = vrot.slane %v892, 4
        %v894 = vadd.f32 %v892, %v893
        %v895 = vrot.slane %v894, 2
        %v896 = vadd.f32 %v894, %v895
        %v897 = vrot.slane %v896, 1
        %v898 = vadd.f32 %v896, %v897
        %v899 = vadd.f32 %v647, %v649
        %v900 = vadd.f32 %v899, %v651
        %v901 = vadd.f32 %v900, %v653
        %v902 = vadd.f32 %v901, %v655
        %v903 = vadd.f32 %v902, %v657
        %v904 = vrot.slane %v903, 4
        %v905 = vadd.f32 %v903, %v904
        %v906 = vrot.slane %v905, 2
        %v907 = vadd.f32 %v905, %v906
        %v908 = vrot.slane %v907, 1
        %v909 = vadd.f32 %v907, %v908
        %v910 = vadd.f32 %v648, %v650
        %v911 = vadd.f32 %v910, %v652
        %v912 = vadd.f32 %v911, %v654
        %v913 = vadd.f32 %v912, %v656
        %v914 = vadd.f32 %v913, %v658
        %v915 = vrot.slane %v914, 4
        %v916 = vadd.f32 %v914, %v915
        %v917 = vrot.slane %v916, 2
        %v918 = vadd.f32 %v916, %v917
        %v919 = vrot.slane %v918, 1
        %v920 = vadd.f32 %v918, %v919
        %v921 = vadd.f32 %v659, %v661
        %v922 = vadd.f32 %v921, %v663
        %v923 = vadd.f32 %v922, %v665
        %v924 = vadd.f32 %v923, %v667
        %v925 = vadd.f32 %v924, %v669
        %v926 = vrot.slane %v925, 4
        %v927 = vadd.f32 %v925, %v926
        %v928 = vrot.slane %v927, 2
        %v929 = vadd.f32 %v927, %v928
        %v930 = vrot.slane %v929, 1
        %v931 = vadd.f32 %v929, %v930
        %v932 = vadd.f32 %v660, %v662
        %v933 = vadd.f32 %v932, %v664
        %v934 = vadd.f32 %v933, %v666
        %v935 = vadd.f32 %v934, %v668
        %v936 = vadd.f32 %v935, %v670
        %v937 = vrot.slane %v936, 4
        %v938 = vadd.f32 %v936, %v937
        %v939 = vrot.slane %v938, 2
        %v940 = vadd.f32 %v938, %v939
        %v941 = vrot.slane %v940, 1
        %v942 = vadd.f32 %v940, %v941
        %v943 = vadd.f32 %v671, %v673
        %v944 = vadd.f32 %v943, %v675
        %v945 = vadd.f32 %v944, %v677
        %v946 = vadd.f32 %v945, %v679
        %v947 = vadd.f32 %v946, %v681
        %v948 = vrot.slane %v947, 4
        %v949 = vadd.f32 %v947, %v948
        %v950 = vrot.slane %v949, 2
        %v951 = vadd.f32 %v949, %v950
        %v952 = vrot.slane %v951, 1
        %v953 = vadd.f32 %v951, %v952
        %v954 = vadd.f32 %v672, %v674
        %v955 = vadd.f32 %v954, %v676
        %v956 = vadd.f32 %v955, %v678
        %v957 = vadd.f32 %v956, %v680
        %v958 = vadd.f32 %v957, %v682
        %v959 = vrot.slane %v958, 4
        %v960 = vadd.f32 %v958, %v959
        %v961 = vrot.slane %v960, 2
        %v962 = vadd.f32 %v960, %v961
        %v963 = vrot.slane %v962, 1
        %v964 = vadd.f32 %v962, %v963
        %v965 = vadd.f32 %v683, %v685
        %v966 = vadd.f32 %v965, %v687
        %v967 = vadd.f32 %v966, %v689
        %v968 = vadd.f32 %v967, %v691
        %v969 = vadd.f32 %v968, %v693
        %v970 = vrot.slane %v969, 4
        %v971 = vadd.f32 %v969, %v970
        %v972 = vrot.slane %v971, 2
        %v973 = vadd.f32 %v971, %v972
        %v974 = vrot.slane %v973, 1
        %v975 = vadd.f32 %v973, %v974
        %v976 = vadd.f32 %v684, %v686
        %v977 = vadd.f32 %v976, %v688
        %v978 = vadd.f32 %v977, %v690
        %v979 = vadd.f32 %v978, %v692
        %v980 = vadd.f32 %v979, %v694
        %v981 = vrot.slane %v980, 4
        %v982 = vadd.f32 %v980, %v981
        %v983 = vrot.slane %v982, 2
        %v984 = vadd.f32 %v982, %v983
        %v985 = vrot.slane %v984, 1
        %v986 = vadd.f32 %v984, %v985
        %v987 = vadd.f32 %v695, %v697
        %v988 = vadd.f32 %v987, %v699
        %v989 = vadd.f32 %v988, %v701
        %v990 = vadd.f32 %v989, %v703
        %v991 = vadd.f32 %v990, %v705
        %v992 = vrot.slane %v991, 4
        %v993 = vadd.f32 %v991, %v992
        %v994 = vrot.slane %v993, 2
        %v995 = vadd.f32 %v993, %v994
        %v996 = vrot.slane %v995, 1
        %v997 = vadd.f32 %v995, %v996
        %v998 = vadd.f32 %v696, %v698
        %v999 = vadd.f32 %v998, %v700
        %v1000 = vadd.f32 %v999, %v702
        %v1001 = vadd.f32 %v1000, %v704
        %v1002 = vadd.f32 %v1001, %v706
        %v1003 = vrot.slane %v1002, 4
        %v1004 = vadd.f32 %v1002, %v1003
        %v1005 = vrot.slane %v1004, 2
        %v1006 = vadd.f32 %v1004, %v1005
        %v1007 = vrot.slane %v1006, 1
        %v1008 = vadd.f32 %v1006, %v1007
        %v1009 = vadd.f32 %v707, %v709
        %v1010 = vadd.f32 %v1009, %v711
        %v1011 = vadd.f32 %v1010, %v713
        %v1012 = vadd.f32 %v1011, %v715
        %v1013 = vadd.f32 %v1012, %v717
        %v1014 = vrot.slane %v1013, 4
        %v1015 = vadd.f32 %v1013, %v1014
        %v1016 = vrot.slane %v1015, 2
        %v1017 = vadd.f32 %v1015, %v1016
        %v1018 = vrot.slane %v1017, 1
        %v1019 = vadd.f32 %v1017, %v1018
        %v1020 = vadd.f32 %v708, %v710
        %v1021 = vadd.f32 %v1020, %v712
        %v1022 = vadd.f32 %v1021, %v714
        %v1023 = vadd.f32 %v1022, %v716
        %v1024 = vadd.f32 %v1023, %v718
        %v1025 = vrot.slane %v1024, 4
        %v1026 = vadd.f32 %v1024, %v1025
        %v1027 = vrot.slane %v1026, 2
        %v1028 = vadd.f32 %v1026, %v1027
        %v1029 = vrot.slane %v1028, 1
        %v1030 = vadd.f32 %v1028, %v1029
        %v1031 = vadd.f32 %v719, %v721
        %v1032 = vadd.f32 %v1031, %v723
        %v1033 = vadd.f32 %v1032, %v725
        %v1034 = vadd.f32 %v1033, %v727
        %v1035 = vadd.f32 %v1034, %v729
        %v1036 = vrot.slane %v1035, 4
        %v1037 = vadd.f32 %v1035, %v1036
        %v1038 = vrot.slane %v1037, 2
        %v1039 = vadd.f32 %v1037, %v1038
        %v1040 = vrot.slane %v1039, 1
        %v1041 = vadd.f32 %v1039, %v1040
        %v1042 = vadd.f32 %v720, %v722
        %v1043 = vadd.f32 %v1042, %v724
        %v1044 = vadd.f32 %v1043, %v726
        %v1045 = vadd.f32 %v1044, %v728
        %v1046 = vadd.f32 %v1045, %v730
        %v1047 = vrot.slane %v1046, 4
        %v1048 = vadd.f32 %v1046, %v1047
        %v1049 = vrot.slane %v1048, 2
        %v1050 = vadd.f32 %v1048, %v1049
        %v1051 = vrot.slane %v1050, 1
        %v1052 = vadd.f32 %v1050, %v1051
        %v1053 = vadd.f32 %v731, %v733
        %v1054 = vadd.f32 %v1053, %v735
        %v1055 = vadd.f32 %v1054, %v737
        %v1056 = vadd.f32 %v1055, %v739
        %v1057 = vadd.f32 %v1056, %v741
        %v1058 = vrot.slane %v1057, 4
        %v1059 = vadd.f32 %v1057, %v1058
        %v1060 = vrot.slane %v1059, 2
        %v1061 = vadd.f32 %v1059, %v1060
        %v1062 = vrot.slane %v1061, 1
        %v1063 = vadd.f32 %v1061, %v1062
        %v1064 = vadd.f32 %v732, %v734
        %v1065 = vadd.f32 %v1064, %v736
        %v1066 = vadd.f32 %v1065, %v738
        %v1067 = vadd.f32 %v1066, %v740
        %v1068 = vadd.f32 %v1067, %v742
        %v1069 = vrot.slane %v1068, 4
        %v1070 = vadd.f32 %v1068, %v1069
        %v1071 = vrot.slane %v1070, 2
        %v1072 = vadd.f32 %v1070, %v1071
        %v1073 = vrot.slane %v1072, 1
        %v1074 = vadd.f32 %v1072, %v1073
        %v1075 = vadd.f32 %v743, %v745
        %v1076 = vadd.f32 %v1075, %v747
        %v1077 = vadd.f32 %v1076, %v749
        %v1078 = vadd.f32 %v1077, %v751
        %v1079 = vadd.f32 %v1078, %v753
        %v1080 = vrot.slane %v1079, 4
        %v1081 = vadd.f32 %v1079, %v1080
        %v1082 = vrot.slane %v1081, 2
        %v1083 = vadd.f32 %v1081, %v1082
        %v1084 = vrot.slane %v1083, 1
        %v1085 = vadd.f32 %v1083, %v1084
        %v1086 = vadd.f32 %v744, %v746
        %v1087 = vadd.f32 %v1086, %v748
        %v1088 = vadd.f32 %v1087, %v750
        %v1089 = vadd.f32 %v1088, %v752
        %v1090 = vadd.f32 %v1089, %v754
        %v1091 = vrot.slane %v1090, 4
        %v1092 = vadd.f32 %v1090, %v1091
        %v1093 = vrot.slane %v1092, 2
        %v1094 = vadd.f32 %v1092, %v1093
        %v1095 = vrot.slane %v1094, 1
        %v1096 = vadd.f32 %v1094, %v1095
        %v1097 = vadd.f32 %v755, %v757
        %v1098 = vadd.f32 %v1097, %v759
        %v1099 = vadd.f32 %v1098, %v761
        %v1100 = vadd.f32 %v1099, %v763
        %v1101 = vadd.f32 %v1100, %v765
        %v1102 = vrot.slane %v1101, 4
        %v1103 = vadd.f32 %v1101, %v1102
        %v1104 = vrot.slane %v1103, 2
        %v1105 = vadd.f32 %v1103, %v1104
        %v1106 = vrot.slane %v1105, 1
        %v1107 = vadd.f32 %v1105, %v1106
        %v1108 = vadd.f32 %v756, %v758
        %v1109 = vadd.f32 %v1108, %v760
        %v1110 = vadd.f32 %v1109, %v762
        %v1111 = vadd.f32 %v1110, %v764
        %v1112 = vadd.f32 %v1111, %v766
        %v1113 = vrot.slane %v1112, 4
        %v1114 = vadd.f32 %v1112, %v1113
        %v1115 = vrot.slane %v1114, 2
        %v1116 = vadd.f32 %v1114, %v1115
        %v1117 = vrot.slane %v1116, 1
        %v1118 = vadd.f32 %v1116, %v1117
        %v1119 = vrcp.pop 48.0
        %v1120 = vmul.f32 %v777, %v1119
        %v1121 = vmul.f32 %v788, %v1119
        %v1122 = vmul.f32 %v799, %v1119
        %v1123 = vmul.f32 %v810, %v1119
        %v1124 = vmul.f32 %v821, %v1119
        %v1125 = vmul.f32 %v832, %v1119
        %v1126 = vmul.f32 %v843, %v1119
        %v1127 = vmul.f32 %v854, %v1119
        %v1128 = vmul.f32 %v865, %v1119
        %v1129 = vmul.f32 %v876, %v1119
        %v1130 = vmul.f32 %v887, %v1119
        %v1131 = vmul.f32 %v898, %v1119
        %v1132 = vmul.f32 %v909, %v1119
        %v1133 = vmul.f32 %v920, %v1119
        %v1134 = vmul.f32 %v931, %v1119
        %v1135 = vmul.f32 %v942, %v1119
        %v1136 = vmul.f32 %v953, %v1119
        %v1137 = vmul.f32 %v964, %v1119
        %v1138 = vmul.f32 %v975, %v1119
        %v1139 = vmul.f32 %v986, %v1119
        %v1140 = vmul.f32 %v997, %v1119
        %v1141 = vmul.f32 %v1008, %v1119
        %v1142 = vmul.f32 %v1019, %v1119
        %v1143 = vmul.f32 %v1030, %v1119
        %v1144 = vmul.f32 %v1041, %v1119
        %v1145 = vmul.f32 %v1052, %v1119
        %v1146 = vmul.f32 %v1063, %v1119
        %v1147 = vmul.f32 %v1074, %v1119
        %v1148 = vmul.f32 %v1085, %v1119
        %v1149 = vmul.f32 %v1096, %v1119
        %v1150 = vmul.f32 %v1107, %v1119
        %v1151 = vmul.f32 %v1118, %v1119
        %vm1184 = vcmask 1041409
        %v1185 = vsel %vm1184, %v1122, %v1120
        %vm1186 = vcmask 1042434
        %v1187 = vsel %vm1186, %v1124, %v1185
        %vm1188 = vcmask 1043459
        %v1189 = vsel %vm1188, %v1126, %v1187
        %vm1190 = vcmask 1044484
        %v1191 = vsel %vm1190, %v1128, %v1189
        %vm1192 = vcmask 1045509
        %v1193 = vsel %vm1192, %v1130, %v1191
        %vm1194 = vcmask 1046534
        %v1195 = vsel %vm1194, %v1132, %v1193
        %vm1196 = vcmask 1047559
        %v1197 = vsel %vm1196, %v1134, %v1195
        %v1198 = vsel %vm1184, %v1123, %v1121
        %v1199 = vsel %vm1186, %v1125, %v1198
        %v1200 = vsel %vm1188, %v1127, %v1199
        %v1201 = vsel %vm1190, %v1129, %v1200
        %v1202 = vsel %vm1192, %v1131, %v1201
        %v1203 = vsel %vm1194, %v1133, %v1202
        %v1204 = vsel %vm1196, %v1135, %v1203
        %v1205 = vsel %vm1184, %v1138, %v1136
        %v1206 = vsel %vm1186, %v1140, %v1205
        %v1207 = vsel %vm1188, %v1142, %v1206
        %v1208 = vsel %vm1190, %v1144, %v1207
        %v1209 = vsel %vm1192, %v1146, %v1208
        %v1210 = vsel %vm1194, %v1148, %v1209
        %v1211 = vsel %vm1196, %v1150, %v1210
        %v1212 = vsel %vm1184, %v1139, %v1137
        %v1213 = vsel %vm1186, %v1141, %v1212
        %v1214 = vsel %vm1188, %v1143, %v1213
        %v1215 = vsel %vm1190, %v1145, %v1214
        %v1216 = vsel %vm1192, %v1147, %v1215
        %v1217 = vsel %vm1194, %v1149, %v1216
        %v1218 = vsel %vm1196, %v1151, %v1217
        %1223 = vst [vmem:[%s466] sm:$0xff] %v1197
        %1224 = vst [vmem:[%s466 + $0x8] sm:$0xff] %v1204
        %1225 = vst [vmem:[%s466 + $0x10] sm:$0xff] %v1211
        %1226 = vst [vmem:[%s466 + $0x18] sm:$0xff] %v1218
        %v1227 = vpack.c.bf16 %v1120, %v1120
        %v1228 = vpack.c.bf16 %v1121, %v1121
        %v1229 = vpack.c.bf16 %v1122, %v1122
        %v1230 = vpack.c.bf16 %v1123, %v1123
        %v1231 = vpack.c.bf16 %v1124, %v1124
        %v1232 = vpack.c.bf16 %v1125, %v1125
        %v1233 = vpack.c.bf16 %v1126, %v1126
        %v1234 = vpack.c.bf16 %v1127, %v1127
        %v1235 = vpack.c.bf16 %v1128, %v1128
        %v1236 = vpack.c.bf16 %v1129, %v1129
        %v1237 = vpack.c.bf16 %v1130, %v1130
        %v1238 = vpack.c.bf16 %v1131, %v1131
        %v1239 = vpack.c.bf16 %v1132, %v1132
        %v1240 = vpack.c.bf16 %v1133, %v1133
        %v1241 = vpack.c.bf16 %v1134, %v1134
        %v1242 = vpack.c.bf16 %v1135, %v1135
        %v1243 = vpack.c.bf16 %v1136, %v1136
        %v1244 = vpack.c.bf16 %v1137, %v1137
        %v1245 = vpack.c.bf16 %v1138, %v1138
        %v1246 = vpack.c.bf16 %v1139, %v1139
        %v1247 = vpack.c.bf16 %v1140, %v1140
        %v1248 = vpack.c.bf16 %v1141, %v1141
        %v1249 = vpack.c.bf16 %v1142, %v1142
        %v1250 = vpack.c.bf16 %v1143, %v1143
        %v1251 = vpack.c.bf16 %v1144, %v1144
        %v1252 = vpack.c.bf16 %v1145, %v1145
        %v1253 = vpack.c.bf16 %v1146, %v1146
        %v1254 = vpack.c.bf16 %v1147, %v1147
        %v1255 = vpack.c.bf16 %v1148, %v1148
        %v1256 = vpack.c.bf16 %v1149, %v1149
        %v1257 = vpack.c.bf16 %v1150, %v1150
        %v1258 = vpack.c.bf16 %v1151, %v1151
        %v1259 = vld [vmem:[%s395] sm:$0xff]
        %v1260 = vld [vmem:[%s395 + $0x8] sm:$0xff]
        %v1261 = vld [vmem:[%s395 + $0x10] sm:$0xff]
        %v1262 = vld [vmem:[%s395 + $0x18] sm:$0xff]
        %v1263 = vld [vmem:[%s395 + $0x20] sm:$0xff]
        %v1264 = vld [vmem:[%s395 + $0x28] sm:$0xff]
        %v1265 = vld [vmem:[%s395 + $0x30] sm:$0xff]
        %v1266 = vld [vmem:[%s395 + $0x38] sm:$0xff]
        %v1267 = vld [vmem:[%s395 + $0x40] sm:$0xff]
        %v1268 = vld [vmem:[%s395 + $0x48] sm:$0xff]
        %v1269 = vld [vmem:[%s395 + $0x50] sm:$0xff]
        %v1270 = vld [vmem:[%s395 + $0x58] sm:$0xff]
        %v1271 = vld [vmem:[%s395 + $0x60] sm:$0xff]
        %v1272 = vld [vmem:[%s395 + $0x68] sm:$0xff]
        %v1273 = vld [vmem:[%s395 + $0x70] sm:$0xff]
        %v1274 = vld [vmem:[%s395 + $0x78] sm:$0xff]
        %v1275 = vld [vmem:[%s395 + $0x80] sm:$0xff]
        %v1276 = vld [vmem:[%s395 + $0x88] sm:$0xff]
        %v1277 = vld [vmem:[%s395 + $0x90] sm:$0xff]
        %v1278 = vld [vmem:[%s395 + $0x98] sm:$0xff]
        %v1279 = vld [vmem:[%s395 + $0xa0] sm:$0xff]
        %v1280 = vld [vmem:[%s395 + $0xa8] sm:$0xff]
        %v1281 = vld [vmem:[%s395 + $0xb0] sm:$0xff]
        %v1282 = vld [vmem:[%s395 + $0xb8] sm:$0xff]
        %v1283 = vld [vmem:[%s395 + $0xc0] sm:$0xff]
        %v1284 = vld [vmem:[%s395 + $0xc8] sm:$0xff]
        %v1285 = vld [vmem:[%s395 + $0xd0] sm:$0xff]
        %v1286 = vld [vmem:[%s395 + $0xd8] sm:$0xff]
        %v1287 = vld [vmem:[%s395 + $0xe0] sm:$0xff]
        %v1288 = vld [vmem:[%s395 + $0xe8] sm:$0xff]
        %v1289 = vld [vmem:[%s395 + $0xf0] sm:$0xff]
        %v1290 = vld [vmem:[%s395 + $0xf8] sm:$0xff]
        %v1291 = vld [vmem:[%s404] sm:$0x3]
        %v1293 = vlaneseq
        %v1294 = vshrl.u32 %v1293, 7
        %v1295 = vsub.s32 0, %v1294
        %v1296 = vrot.slane %v1291, %v1295
        %v1297 = vlaneseq
        %v1298 = vshrl.u32 %v1297, 7
        %v1299 = vsub.s32 1, %v1298
        %v1300 = vrot.slane %v1291, %v1299
        %v1335 = vunpack.c.l.b16 %v1227
        %v1336 = vunpack.c.l.b16 %v1228
        %v1337 = vunpack.c.l.b16 %v1229
        %v1338 = vunpack.c.l.b16 %v1230
        %v1339 = vunpack.c.l.b16 %v1231
        %v1340 = vunpack.c.l.b16 %v1232
        %v1341 = vunpack.c.l.b16 %v1233
        %v1342 = vunpack.c.l.b16 %v1234
        %v1343 = vunpack.c.l.b16 %v1235
        %v1344 = vunpack.c.l.b16 %v1236
        %v1345 = vunpack.c.l.b16 %v1237
        %v1346 = vunpack.c.l.b16 %v1238
        %v1347 = vunpack.c.l.b16 %v1239
        %v1348 = vunpack.c.l.b16 %v1240
        %v1349 = vunpack.c.l.b16 %v1241
        %v1350 = vunpack.c.l.b16 %v1242
        %v1351 = vunpack.c.l.b16 %v1243
        %v1352 = vunpack.c.l.b16 %v1244
        %v1353 = vunpack.c.l.b16 %v1245
        %v1354 = vunpack.c.l.b16 %v1246
        %v1355 = vunpack.c.l.b16 %v1247
        %v1356 = vunpack.c.l.b16 %v1248
        %v1357 = vunpack.c.l.b16 %v1249
        %v1358 = vunpack.c.l.b16 %v1250
        %v1359 = vunpack.c.l.b16 %v1251
        %v1360 = vunpack.c.l.b16 %v1252
        %v1361 = vunpack.c.l.b16 %v1253
        %v1362 = vunpack.c.l.b16 %v1254
        %v1363 = vunpack.c.l.b16 %v1255
        %v1364 = vunpack.c.l.b16 %v1256
        %v1365 = vunpack.c.l.b16 %v1257
        %v1366 = vunpack.c.l.b16 %v1258
        %v1367 = vsel %vm1184, %v1337, %v1335
        %v1368 = vsel %vm1186, %v1339, %v1367
        %v1369 = vsel %vm1188, %v1341, %v1368
        %v1370 = vsel %vm1190, %v1343, %v1369
        %v1371 = vsel %vm1192, %v1345, %v1370
        %v1372 = vsel %vm1194, %v1347, %v1371
        %v1373 = vsel %vm1196, %v1349, %v1372
        %v1374 = vsel %vm1184, %v1338, %v1336
        %v1375 = vsel %vm1186, %v1340, %v1374
        %v1376 = vsel %vm1188, %v1342, %v1375
        %v1377 = vsel %vm1190, %v1344, %v1376
        %v1378 = vsel %vm1192, %v1346, %v1377
        %v1379 = vsel %vm1194, %v1348, %v1378
        %v1380 = vsel %vm1196, %v1350, %v1379
        %v1381 = vsel %vm1184, %v1353, %v1351
        %v1382 = vsel %vm1186, %v1355, %v1381
        %v1383 = vsel %vm1188, %v1357, %v1382
        %v1384 = vsel %vm1190, %v1359, %v1383
        %v1385 = vsel %vm1192, %v1361, %v1384
        %v1386 = vsel %vm1194, %v1363, %v1385
        %v1387 = vsel %vm1196, %v1365, %v1386
        %v1388 = vsel %vm1184, %v1354, %v1352
        %v1389 = vsel %vm1186, %v1356, %v1388
        %v1390 = vsel %vm1188, %v1358, %v1389
        %v1391 = vsel %vm1190, %v1360, %v1390
        %v1392 = vsel %vm1192, %v1362, %v1391
        %v1393 = vsel %vm1194, %v1364, %v1392
        %v1394 = vsel %vm1196, %v1366, %v1393
        %v1395 = vpack.c.b16 %v1387, %v1373
        %v1396 = vpack.c.b16 %v1394, %v1380
        %v1431 = vunpack.c.l.b16 %v1259
        %v1432 = vunpack.c.h.b16 %v1259
        %v1433 = vunpack.c.l.b16 %v1260
        %v1434 = vunpack.c.h.b16 %v1260
        %v1435 = vunpack.c.l.b16 %v1261
        %v1436 = vunpack.c.h.b16 %v1261
        %v1437 = vunpack.c.l.b16 %v1262
        %v1438 = vunpack.c.h.b16 %v1262
        %v1439 = vunpack.c.l.b16 %v1263
        %v1440 = vunpack.c.h.b16 %v1263
        %v1441 = vunpack.c.l.b16 %v1264
        %v1442 = vunpack.c.h.b16 %v1264
        %v1443 = vunpack.c.l.b16 %v1265
        %v1444 = vunpack.c.h.b16 %v1265
        %v1445 = vunpack.c.l.b16 %v1266
        %v1446 = vunpack.c.h.b16 %v1266
        %v1447 = vunpack.c.l.b16 %v1267
        %v1448 = vunpack.c.h.b16 %v1267
        %v1449 = vunpack.c.l.b16 %v1268
        %v1450 = vunpack.c.h.b16 %v1268
        %v1451 = vunpack.c.l.b16 %v1269
        %v1452 = vunpack.c.h.b16 %v1269
        %v1453 = vunpack.c.l.b16 %v1270
        %v1454 = vunpack.c.h.b16 %v1270
        %v1455 = vunpack.c.l.b16 %v1271
        %v1456 = vunpack.c.h.b16 %v1271
        %v1457 = vunpack.c.l.b16 %v1272
        %v1458 = vunpack.c.h.b16 %v1272
        %v1459 = vunpack.c.l.b16 %v1273
        %v1460 = vunpack.c.h.b16 %v1273
        %v1461 = vunpack.c.l.b16 %v1274
        %v1462 = vunpack.c.h.b16 %v1274
        %v1463 = vunpack.c.l.b16 %v1275
        %v1464 = vunpack.c.h.b16 %v1275
        %v1465 = vunpack.c.l.b16 %v1276
        %v1466 = vunpack.c.h.b16 %v1276
        %v1467 = vunpack.c.l.b16 %v1277
        %v1468 = vunpack.c.h.b16 %v1277
        %v1469 = vunpack.c.l.b16 %v1278
        %v1470 = vunpack.c.h.b16 %v1278
        %v1471 = vunpack.c.l.b16 %v1279
        %v1472 = vunpack.c.h.b16 %v1279
        %v1473 = vunpack.c.l.b16 %v1280
        %v1474 = vunpack.c.h.b16 %v1280
        %v1475 = vunpack.c.l.b16 %v1281
        %v1476 = vunpack.c.h.b16 %v1281
        %v1477 = vunpack.c.l.b16 %v1282
        %v1478 = vunpack.c.h.b16 %v1282
        %v1479 = vunpack.c.l.b16 %v1283
        %v1480 = vunpack.c.h.b16 %v1283
        %v1481 = vunpack.c.l.b16 %v1284
        %v1482 = vunpack.c.h.b16 %v1284
        %v1483 = vunpack.c.l.b16 %v1285
        %v1484 = vunpack.c.h.b16 %v1285
        %v1485 = vunpack.c.l.b16 %v1286
        %v1486 = vunpack.c.h.b16 %v1286
        %v1487 = vunpack.c.l.b16 %v1287
        %v1488 = vunpack.c.h.b16 %v1287
        %v1489 = vunpack.c.l.b16 %v1288
        %v1490 = vunpack.c.h.b16 %v1288
        %v1491 = vunpack.c.l.b16 %v1289
        %v1492 = vunpack.c.h.b16 %v1289
        %v1493 = vunpack.c.l.b16 %v1290
        %v1494 = vunpack.c.h.b16 %v1290
        %v1495 = vpack.c.b16 %v1433, %v1431
        %v1496 = vpack.c.b16 %v1434, %v1432
        %v1497 = vpack.c.b16 %v1437, %v1435
        %v1498 = vpack.c.b16 %v1438, %v1436
        %v1499 = vpack.c.b16 %v1441, %v1439
        %v1500 = vpack.c.b16 %v1442, %v1440
        %v1501 = vpack.c.b16 %v1445, %v1443
        %v1502 = vpack.c.b16 %v1446, %v1444
        %v1503 = vpack.c.b16 %v1449, %v1447
        %v1504 = vpack.c.b16 %v1450, %v1448
        %v1505 = vpack.c.b16 %v1453, %v1451
        %v1506 = vpack.c.b16 %v1454, %v1452
        %v1507 = vpack.c.b16 %v1457, %v1455
        %v1508 = vpack.c.b16 %v1458, %v1456
        %v1509 = vpack.c.b16 %v1461, %v1459
        %v1510 = vpack.c.b16 %v1462, %v1460
        %v1511 = vpack.c.b16 %v1465, %v1463
        %v1512 = vpack.c.b16 %v1466, %v1464
        %v1513 = vpack.c.b16 %v1469, %v1467
        %v1514 = vpack.c.b16 %v1470, %v1468
        %v1515 = vpack.c.b16 %v1473, %v1471
        %v1516 = vpack.c.b16 %v1474, %v1472
        %v1517 = vpack.c.b16 %v1477, %v1475
        %v1518 = vpack.c.b16 %v1478, %v1476
        %v1519 = vpack.c.b16 %v1481, %v1479
        %v1520 = vpack.c.b16 %v1482, %v1480
        %v1521 = vpack.c.b16 %v1485, %v1483
        %v1522 = vpack.c.b16 %v1486, %v1484
        %v1523 = vpack.c.b16 %v1489, %v1487
        %v1524 = vpack.c.b16 %v1490, %v1488
        %v1525 = vpack.c.b16 %v1493, %v1491
        %v1526 = vpack.c.b16 %v1494, %v1492
        %1559 = vmatprep.subr.bf16.mxu0 %v1510
        %1560 = vmatpush1.bf16.msra.mxu0 %v1509
        %1561 = vmatprep.subr.bf16.mxu0 %v1508
        %1562 = vmatpush1.bf16.msra.mxu0 %v1507
        %1563 = vmatprep.subr.bf16.mxu0 %v1506
        %1564 = vmatpush1.bf16.msra.mxu0 %v1505
        %1565 = vmatprep.subr.bf16.mxu0 %v1504
        %1566 = vmatpush1.bf16.msra.mxu0 %v1503
        %1567 = vmatprep.subr.bf16.mxu0 %v1502
        %1568 = vmatpush1.bf16.msra.mxu0 %v1501
        %1569 = vmatprep.subr.bf16.mxu0 %v1500
        %1570 = vmatpush1.bf16.msra.mxu0 %v1499
        %1571 = vmatprep.subr.bf16.mxu0 %v1498
        %1572 = vmatpush1.bf16.msra.mxu0 %v1497
        %1573 = vmatprep.subr.bf16.mxu0 %v1496
        %1574 = vmatpush1.bf16.msra.mxu0 %v1495
        %1575 = vmatprep.subr.bf16.mxu0 %v1526
        %1576 = vmatpush2.bf16.msra.mxu0 %v1525
        %1577 = vmatprep.subr.bf16.mxu0 %v1524
        %1578 = vmatpush2.bf16.msra.mxu0 %v1523
        %1579 = vmatprep.subr.bf16.mxu0 %v1522
        %1580 = vmatpush2.bf16.msra.mxu0 %v1521
        %1581 = vmatprep.subr.bf16.mxu0 %v1520
        %1582 = vmatpush2.bf16.msra.mxu0 %v1519
        %1583 = vmatprep.subr.bf16.mxu0 %v1518
        %1584 = vmatpush2.bf16.msra.mxu0 %v1517
        %1585 = vmatprep.subr.bf16.mxu0 %v1516
        %1586 = vmatpush2.bf16.msra.mxu0 %v1515
        %1587 = vmatprep.subr.bf16.mxu0 %v1514
        %1588 = vmatpush2.bf16.msra.mxu0 %v1513
        %1589 = vmatprep.subr.bf16.mxu0 %v1512
        %1590 = vmatpush2.bf16.msra.mxu0 %v1511
        %1591 = vmatprep.mubr.bf16.mxu0 %v1396
        %1592 = vmatmul.mubr.bf16.gmra.mxu0 %v1395
        %v1593 = vpop.f32.mrf.mxu0
        %v1594 = vadd.f32 %v1296, %v1593
        %v1595 = vpop.f32.mrf.mxu0
        %v1596 = vadd.f32 %v1300, %v1595
        %v1597 = vpop.f32.mrf.mxu0
        %v1598 = vadd.f32 %v1296, %v1597
        %v1599 = vpop.f32.mrf.mxu0
        %v1600 = vadd.f32 %v1300, %v1599
        %1601 = vdwg.mxu0
        %v1602 = vpack.c.bf16 %v1598, %v1594
        %v1603 = vpack.c.bf16 %v1600, %v1596
        %v1604 = vld [vmem:[%s413] sm:$0xf]
        %v1605 = vld [vmem:[%s413 + $0x4] sm:$0xf]
        %v1606 = vld [vmem:[%s413 + $0x8] sm:$0xf]
        %v1607 = vld [vmem:[%s413 + $0xc] sm:$0xf]
        %v1608 = vld [vmem:[%s413 + $0x10] sm:$0xf]
        %v1609 = vld [vmem:[%s413 + $0x14] sm:$0xf]
        %v1610 = vld [vmem:[%s413 + $0x18] sm:$0xf]
        %v1611 = vld [vmem:[%s413 + $0x1c] sm:$0xf]
        %v1612 = vld [vmem:[%s413 + $0x20] sm:$0xf]
        %v1613 = vld [vmem:[%s413 + $0x24] sm:$0xf]
        %v1614 = vld [vmem:[%s413 + $0x28] sm:$0xf]
        %v1615 = vld [vmem:[%s413 + $0x2c] sm:$0xf]
        %v1616 = vld [vmem:[%s413 + $0x30] sm:$0xf]
        %v1617 = vld [vmem:[%s413 + $0x34] sm:$0xf]
        %v1618 = vld [vmem:[%s413 + $0x38] sm:$0xf]
        %v1619 = vld [vmem:[%s413 + $0x3c] sm:$0xf]
        %v1620 = vld [vmem:[%s413 + $0x40] sm:$0xf]
        %v1621 = vld [vmem:[%s413 + $0x44] sm:$0xf]
        %v1622 = vld [vmem:[%s413 + $0x48] sm:$0xf]
        %v1623 = vld [vmem:[%s413 + $0x4c] sm:$0xf]
        %v1624 = vld [vmem:[%s413 + $0x50] sm:$0xf]
        %v1625 = vld [vmem:[%s413 + $0x54] sm:$0xf]
        %v1626 = vld [vmem:[%s413 + $0x58] sm:$0xf]
        %v1627 = vld [vmem:[%s413 + $0x5c] sm:$0xf]
        %v1628 = vld [vmem:[%s413 + $0x60] sm:$0xf]
        %v1629 = vld [vmem:[%s413 + $0x64] sm:$0xf]
        %v1630 = vld [vmem:[%s413 + $0x68] sm:$0xf]
        %v1631 = vld [vmem:[%s413 + $0x6c] sm:$0xf]
        %v1632 = vld [vmem:[%s413 + $0x70] sm:$0xf]
        %v1633 = vld [vmem:[%s413 + $0x74] sm:$0xf]
        %v1634 = vld [vmem:[%s413 + $0x78] sm:$0xf]
        %v1635 = vld [vmem:[%s413 + $0x7c] sm:$0xf]
        %v1636 = vld [vmem:[%s421] sm:$0x1]
        %v1638 = vlaneseq
        %v1639 = vshrl.u32 %v1638, 7
        %v1640 = vsub.s32 0, %v1639
        %v1641 = vrot.slane %v1636, %v1640
        %v1675 = vunpack.c.l.b16 %v1604
        %v1676 = vunpack.c.l.b16 %v1605
        %v1677 = vunpack.c.l.b16 %v1606
        %v1678 = vunpack.c.l.b16 %v1607
        %v1679 = vunpack.c.l.b16 %v1608
        %v1680 = vunpack.c.l.b16 %v1609
        %v1681 = vunpack.c.l.b16 %v1610
        %v1682 = vunpack.c.l.b16 %v1611
        %v1683 = vunpack.c.l.b16 %v1612
        %v1684 = vunpack.c.l.b16 %v1613
        %v1685 = vunpack.c.l.b16 %v1614
        %v1686 = vunpack.c.l.b16 %v1615
        %v1687 = vunpack.c.l.b16 %v1616
        %v1688 = vunpack.c.l.b16 %v1617
        %v1689 = vunpack.c.l.b16 %v1618
        %v1690 = vunpack.c.l.b16 %v1619
        %v1691 = vunpack.c.l.b16 %v1620
        %v1692 = vunpack.c.l.b16 %v1621
        %v1693 = vunpack.c.l.b16 %v1622
        %v1694 = vunpack.c.l.b16 %v1623
        %v1695 = vunpack.c.l.b16 %v1624
        %v1696 = vunpack.c.l.b16 %v1625
        %v1697 = vunpack.c.l.b16 %v1626
        %v1698 = vunpack.c.l.b16 %v1627
        %v1699 = vunpack.c.l.b16 %v1628
        %v1700 = vunpack.c.l.b16 %v1629
        %v1701 = vunpack.c.l.b16 %v1630
        %v1702 = vunpack.c.l.b16 %v1631
        %v1703 = vunpack.c.l.b16 %v1632
        %v1704 = vunpack.c.l.b16 %v1633
        %v1705 = vunpack.c.l.b16 %v1634
        %v1706 = vunpack.c.l.b16 %v1635
        %v1707 = vpack.c.b16 %v1676, %v1675
        %v1708 = vpack.c.b16 %v1678, %v1677
        %v1709 = vpack.c.b16 %v1680, %v1679
        %v1710 = vpack.c.b16 %v1682, %v1681
        %v1711 = vpack.c.b16 %v1684, %v1683
        %v1712 = vpack.c.b16 %v1686, %v1685
        %v1713 = vpack.c.b16 %v1688, %v1687
        %v1714 = vpack.c.b16 %v1690, %v1689
        %v1715 = vpack.c.b16 %v1692, %v1691
        %v1716 = vpack.c.b16 %v1694, %v1693
        %v1717 = vpack.c.b16 %v1696, %v1695
        %v1718 = vpack.c.b16 %v1698, %v1697
        %v1719 = vpack.c.b16 %v1700, %v1699
        %v1720 = vpack.c.b16 %v1702, %v1701
        %v1721 = vpack.c.b16 %v1704, %v1703
        %v1722 = vpack.c.b16 %v1706, %v1705
        %1739 = vmatprep.subr.bf16.mxu0 0
        %1740 = vmatpush1.bf16.msra.mxu0 %v1714
        %1741 = vmatprep.subr.bf16.mxu0 0
        %1742 = vmatpush1.bf16.msra.mxu0 %v1713
        %1743 = vmatprep.subr.bf16.mxu0 0
        %1744 = vmatpush1.bf16.msra.mxu0 %v1712
        %1745 = vmatprep.subr.bf16.mxu0 0
        %1746 = vmatpush1.bf16.msra.mxu0 %v1711
        %1747 = vmatprep.subr.bf16.mxu0 0
        %1748 = vmatpush1.bf16.msra.mxu0 %v1710
        %1749 = vmatprep.subr.bf16.mxu0 0
        %1750 = vmatpush1.bf16.msra.mxu0 %v1709
        %1751 = vmatprep.subr.bf16.mxu0 0
        %1752 = vmatpush1.bf16.msra.mxu0 %v1708
        %1753 = vmatprep.subr.bf16.mxu0 0
        %1754 = vmatpush1.bf16.msra.mxu0 %v1707
        %1755 = vmatprep.subr.bf16.mxu0 0
        %1756 = vmatpush2.bf16.msra.mxu0 %v1722
        %1757 = vmatprep.subr.bf16.mxu0 0
        %1758 = vmatpush2.bf16.msra.mxu0 %v1721
        %1759 = vmatprep.subr.bf16.mxu0 0
        %1760 = vmatpush2.bf16.msra.mxu0 %v1720
        %1761 = vmatprep.subr.bf16.mxu0 0
        %1762 = vmatpush2.bf16.msra.mxu0 %v1719
        %1763 = vmatprep.subr.bf16.mxu0 0
        %1764 = vmatpush2.bf16.msra.mxu0 %v1718
        %1765 = vmatprep.subr.bf16.mxu0 0
        %1766 = vmatpush2.bf16.msra.mxu0 %v1717
        %1767 = vmatprep.subr.bf16.mxu0 0
        %1768 = vmatpush2.bf16.msra.mxu0 %v1716
        %1769 = vmatprep.subr.bf16.mxu0 0
        %1770 = vmatpush2.bf16.msra.mxu0 %v1715
        %1771 = vmatprep.mubr.bf16.mxu0 %v1603
        %1772 = vmatmul.mubr.bf16.gmra.mxu0 %v1602
        %v1773 = vpop.f32.mrf.mxu0
        %v1774 = vadd.f32 %v1641, %v1773
        %v1775 = vpop.f32.mrf.mxu0
        %v1776 = vpop.f32.mrf.mxu0
        %v1777 = vadd.f32 %v1641, %v1776
        %v1778 = vpop.f32.mrf.mxu0
        %1779 = vdwg.mxu0
        %1780 = vst [vmem:[%s473] sm:$0xff] %v1774
        %1781 = vst [vmem:[%s473 + $0x8] sm:$0xff] %v1777
        %s1782 = sand.u32 %s187, 1
        %s1783 = scalar_lea.sflag [#allocation4], %s1782
        %s1784 = sand.u32 %s187, 1
        %s1785 = smul.addr %s1784, 32
        %s1786 = scalar_lea.vmem [#allocation11], %s1785
        %s1787 = sand.u32 %s215, 1
        %s1788 = scalar_lea.sflag [#allocation13], %s1787
        %s1789 = sand.u32 %s215, 1
        %s1790 = smul.addr %s1789, 16
        %s1791 = scalar_lea.vmem [#allocation12], %s1790
        // Predicated region
        $region61: #{tpu_custom_call.1} parent=39 // pred_check
          %p1792 = pneg %p197
        $region62: #{tpu_custom_call.1} parent=39 // pred_check_branch
          %1794 = sbr.rel (%p1792) target = $region64
        $region63: #{tpu_custom_call.1} parent=39 // pred_region
          %s1795 = smul.u32 2, %s38
          %s1797 = ssub.s32 512, 512
          %1798 = vsyncadd %s1783, %s1797
          %s1799 = smul.addr %s1795, 2
          %s1800 = smul.addr %s37, 8
          %s1801 = sadd.s32 %s1799, %s1800
          %s1802 = smul.addr %s1801, 128
          %s1803 = scalar_lea.hbm %s5, %s1802
          %s1804 = sshll.u32 %s1786, 4
          %s1805 = int_to_ptr.vmem [resolvable:$true] %s1804
          %1810 = dma.vmem_to_hbm [thread:$0]  %s1805, 512, %s1803, %s1783, 256, 256, 16
        $region64: #{tpu_custom_call.1} parent=39 // pred_fallthru
          _
        // Predicated region
        $region65: #{tpu_custom_call.1} parent=39 // pred_check
          %p1811 = pneg %p225
        $region66: #{tpu_custom_call.1} parent=39 // pred_check_branch
          %1813 = sbr.rel (%p1811) target = $region68
        $region67: #{tpu_custom_call.1} parent=39 // pred_region
          %s1814 = smul.u32 2, %s38
          %s1816 = ssub.s32 256, 256
          %1817 = vsyncadd %s1788, %s1816
          %s1818 = smul.addr %s37, 4
          %s1819 = sadd.s32 %s1814, %s1818
          %s1820 = smul.addr %s1819, 128
          %s1821 = scalar_lea.hbm %s6, %s1820
          %s1822 = sshll.u32 %s1791, 4
          %s1823 = int_to_ptr.vmem [resolvable:$true] %s1822
          %1828 = dma.vmem_to_hbm [thread:$0]  %s1823, 256, %s1821, %s1788, 128, 128, 8
        $region68: #{tpu_custom_call.1} parent=39 // pred_fallthru
          _
      $region40: #{tpu_custom_call.1} parent=5 // pred_fallthru
        _
      %p1829 = scmp.le.s32.totalorder 2, %s28
      // Predicated region
      $region69: #{tpu_custom_call.1} parent=5 // pred_check
        %p1830 = pneg %p1829
      $region70: #{tpu_custom_call.1} parent=5 // pred_check_branch
        %1832 = sbr.rel (%p1830) target = $region72
      $region71: #{tpu_custom_call.1} parent=5 // pred_region
        %s1833 = ssub.s32 %s28, 2
        // Predicated region
        $region73: #{tpu_custom_call.1} parent=71 // pred_check
          %p1834 = pneg %p203
        $region74: #{tpu_custom_call.1} parent=71 // pred_check_branch
          %1836 = sbr.rel (%p1834) target = $region76
        $region75: #{tpu_custom_call.1} parent=71 // pred_region
          %s1837 = sand.u32 %s188, 1
          %s1838 = scalar_lea.sflag [#allocation4], %s1837
          %s1839 = sand.u32 %s188, 1
          %s1840 = smul.addr %s1839, 32
          %s1841 = scalar_lea.vmem [#allocation11], %s1840
          %1842 = dma.done %s1838, 512
        $region76: #{tpu_custom_call.1} parent=71 // pred_fallthru
          _
        // Predicated region
        $region77: #{tpu_custom_call.1} parent=71 // pred_check
          %p1843 = pneg %p231
        $region78: #{tpu_custom_call.1} parent=71 // pred_check_branch
          %1845 = sbr.rel (%p1843) target = $region80
        $region79: #{tpu_custom_call.1} parent=71 // pred_region
          %s1846 = sand.u32 %s216, 1
          %s1847 = scalar_lea.sflag [#allocation13], %s1846
          %s1848 = sand.u32 %s216, 1
          %s1849 = smul.addr %s1848, 16
          %s1850 = scalar_lea.vmem [#allocation12], %s1849
          %1851 = dma.done %s1847, 256
        $region80: #{tpu_custom_call.1} parent=71 // pred_fallthru
          _
      $region72: #{tpu_custom_call.1} parent=5 // pred_fallthru
        _
    $region6: #{tpu_custom_call.1} parent=1 // loop_footer
      %s32 = sadd.s32 1, %s28
    $region7: #{tpu_custom_call.1} parent=1 // loop_footer_branch
      %27 = sbr.rel target = $region3
    $region8: #{tpu_custom_call.1} parent=1 // loop_exit
      _
    %1852 = vsyncpa [#allocation3], 1
    %s1853 = scalar_lea.sflag [#allocation3], 1
    %1854 = vsyncpa %s1853, 1
    %1855 = vsyncpa [#allocation6], 1
    %s1856 = scalar_lea.sflag [#allocation6], 1
    %1857 = vsyncpa %s1856, 1
    %1858 = vsyncpa [#allocation9], 1
    %s1859 = scalar_lea.sflag [#allocation9], 1
    %1860 = vsyncpa %s1859, 1
    %1861 = vsyncpa [#allocation4], 1
    %s1862 = scalar_lea.sflag [#allocation4], 1
    %1863 = vsyncpa %s1862, 1
    %1864 = vsyncpa [#allocation13], 1
    %s1865 = scalar_lea.sflag [#allocation13], 1
    %1866 = vsyncpa %s1865, 1

</llo_original>
